<compile_context>
chip_gen: v6e
topology: v6e:2x2x1
jax: 0.10.0
libtpu: 0.0.40
codegen_flags: <defaults>
</compile_context>

<pallas_src>
import jax
import jax.numpy as jnp
from jax.experimental import pallas as pl
from jax.experimental.pallas import tpu as pltpu

L = 19          # sequence length (fixed by nn.Linear(19*32, 2))
C_IN = 52
C1 = 16
C2 = 32
N_OUT = 2
OUT_PAD = 128   # lane-dense output width (first N_OUT columns are real)

D_IN = L * C_IN    # 988
D_H1 = L * C1      # 304
D_H2 = L * C2      # 608


def _round_up(n, m):
    return (n + m - 1) // m * m


def fused_cnn_kernel(x_ref, w1_ref, b1_ref, w2_ref, b2_ref, w3_ref, b3_ref,
                     o_ref):
    """Three back-to-back MXU matmuls; all intermediates stay in VMEM."""
    # conv1 (1x1) + ReLU as one block-diagonal matmul.
    h1 = jnp.dot(x_ref[...], w1_ref[...], preferred_element_type=jnp.float32)
    h1 = jnp.maximum(h1 + b1_ref[...], 0.0).astype(w2_ref.dtype)   # (TB, 304)
    # conv2 (1x1) + ReLU.
    h2 = jnp.dot(h1, w2_ref[...], preferred_element_type=jnp.float32)
    h2 = jnp.maximum(h2 + b2_ref[...], 0.0).astype(w3_ref.dtype)   # (TB, 608)
    # Final Linear (PyTorch flatten order folded into w3 at prepare time).
    out = jnp.dot(h2, w3_ref[...], preferred_element_type=jnp.float32)
    o_ref[...] = out + b3_ref[...]                                 # (TB, 128)


def prepare_cnn_params(params, dtype=jnp.bfloat16):
    """One-time (trace-time) weight preprocessing; cache the result.

    params = (w1, b1, w2, b2, w_out, b_out) with PyTorch shapes:
      w1: (16, 52)  [Conv1d weight squeezed over its kernel dim]
      w2: (32, 16), w_out: (2, 608), b_out: (2,).
    """
    w1, b1, w2, b2, w_out, b_out = params
    eye = jnp.eye(L, dtype=jnp.float32)
    # Block-diagonal conv weights: h1[b, l*C1+o] = sum_c x[b, l*C_IN+c] * w1[o, c]
    w1_bd = jnp.kron(eye, w1.astype(jnp.float32).T).astype(dtype)   # (988, 304)
    w2_bd = jnp.kron(eye, w2.astype(jnp.float32).T).astype(dtype)   # (304, 608)
    # Fold PyTorch's channel-major flatten (idx = c*L + l) into the Linear weight
    # so it consumes our (idx = l*C2 + c) layout directly; zero-pad to 128 lanes.
    w3 = (w_out.astype(jnp.float32)
          .reshape(N_OUT, C2, L).transpose(0, 2, 1)
          .reshape(N_OUT, D_H2).T)                                  # (608, 2)
    w3_pad = jnp.pad(w3, ((0, 0), (0, OUT_PAD - N_OUT))).astype(dtype)
    b1_w = jnp.tile(b1.astype(jnp.float32), L).reshape(1, D_H1)
    b2_w = jnp.tile(b2.astype(jnp.float32), L).reshape(1, D_H2)
    b3_w = jnp.pad(b_out.astype(jnp.float32),
                   (0, OUT_PAD - N_OUT)).reshape(1, OUT_PAD)
    return (w1_bd, b1_w, w2_bd, b2_w, w3_pad, b3_w)


def cnn_forward(x, prepared, *, batch_tile=None):
    """x: (B, 19, 52); prepared = prepare_cnn_params(params). Returns (B, 2)."""
    w1_bd, b1_w, w2_bd, b2_w, w3_pad, b3_w = prepared
    act_dtype = w1_bd.dtype
    B = x.shape[0]

    # Batch tile: multiple of 8 (sublane alignment).  Default aims for >= 2 grid
    # steps (so both v7x TensorCores get work on medium batches) and caps at 256
    # rows/step, keeping per-step VMEM ~4 MiB on every generation.
    if batch_tile is not None:
        TB = max(8, _round_up(int(batch_tile), 8))
    else:
        TB = min(256, max(8, _round_up(pl.cdiv(B, 2), 8)))
    B_pad = _round_up(B, TB)

    x_wide = x.reshape(B, D_IN).astype(act_dtype)   # free reshape: col = l*C_IN + c
    if B_pad != B:
        x_wide = jnp.pad(x_wide, ((0, B_pad - B), (0, 0)))

    out = pl.pallas_call(
        fused_cnn_kernel,
        out_shape=jax.ShapeDtypeStruct((B_pad, OUT_PAD), jnp.float32),
        grid_spec=pl.GridSpec(
            grid=(B_pad // TB,),
            in_specs=[
                pl.BlockSpec((TB, D_IN), lambda i: (i, 0)),     # batch-tiled x
                pl.BlockSpec((D_IN, D_H1), lambda i: (0, 0)),   # resident weights
                pl.BlockSpec((1, D_H1), lambda i: (0, 0)),
                pl.BlockSpec((D_H1, D_H2), lambda i: (0, 0)),
                pl.BlockSpec((1, D_H2), lambda i: (0, 0)),
                pl.BlockSpec((D_H2, OUT_PAD), lambda i: (0, 0)),
                pl.BlockSpec((1, OUT_PAD), lambda i: (0, 0)),
            ],
            out_specs=pl.BlockSpec((TB, OUT_PAD), lambda i: (i, 0)),
        ),
        compiler_params=pltpu.CompilerParams(
            # Batch tiles are independent -> v7x shards them over its 2 TCs.
            dimension_semantics=("parallel",),
            vmem_limit_bytes=32 * 1024 * 1024,
        ),
    )(x_wide, w1_bd, b1_w, w2_bd, b2_w, w3_pad, b3_w)
    return out[:B, :N_OUT]


def cnn_reference(x, params):
    """Plain-JAX f32 replica of the PyTorch forward, for verification."""
    w1, b1, w2, b2, w_out, b_out = params
    xp = jnp.transpose(x, (0, 2, 1))                                   # (B, 52, 19)
    h1 = jax.nn.relu(jnp.einsum('oc,bcl->bol', w1, xp) + b1[None, :, None])
    h2 = jax.nn.relu(jnp.einsum('oc,bcl->bol', w2, h1) + b2[None, :, None])
    flat = h2.reshape(x.shape[0], -1)                 # (B, 608), idx = c*19 + l
    return flat @ w_out.T + b_out


if __name__ == "__main__":
    key = jax.random.PRNGKey(0)
    k = jax.random.split(key, 7)
    B = 2
    x = jax.random.normal(k[0], (B, L, C_IN), dtype=jnp.float32)

    # Deterministic synthetic parameters (shapes match the PyTorch module;
    # Conv1d(52,16,1).weight is (16,52,1) -> stored squeezed as (16,52), etc.).
    w1 = jax.random.normal(k[1], (C1, C_IN), dtype=jnp.float32) * 0.1
    b1 = jax.random.normal(k[2], (C1,), dtype=jnp.float32) * 0.1
    w2 = jax.random.normal(k[3], (C2, C1), dtype=jnp.float32) * 0.1
    b2 = jax.random.normal(k[4], (C2,), dtype=jnp.float32) * 0.1
    w_out = jax.random.normal(k[5], (N_OUT, L * C2), dtype=jnp.float32) * 0.05
    b_out = jax.random.normal(k[6], (N_OUT,), dtype=jnp.float32) * 0.05
    params = (w1, b1, w2, b2, w_out, b_out)

    prepared = prepare_cnn_params(params, dtype=jnp.bfloat16)   # one-time prep
    out = jax.block_until_ready(cnn_forward(x, prepared))
    ref = cnn_reference(x, params)
    assert out.shape == (B, N_OUT), out.shape
    # bf16 inputs/weights with f32 accumulation -> loosened tolerance vs f32 ref.
    assert jnp.allclose(out, ref, atol=2e-2, rtol=2e-2), (out, ref)
    print("KERNEL_OK")
</pallas_src>

<mosaic_0001>
module attributes {stable_mosaic.version = 11 : i64} {
  func.func @fused_cnn_kernel(%arg0: i32, %arg1: memref<8x988xbf16, #tpu.memory_space<vmem>>, %arg2: memref<988x304xbf16, #tpu.memory_space<vmem>>, %arg3: memref<1x304xf32, #tpu.memory_space<vmem>>, %arg4: memref<304x608xbf16, #tpu.memory_space<vmem>>, %arg5: memref<1x608xf32, #tpu.memory_space<vmem>>, %arg6: memref<608x128xbf16, #tpu.memory_space<vmem>>, %arg7: memref<1x128xf32, #tpu.memory_space<vmem>>, %arg8: memref<8x128xf32, #tpu.memory_space<vmem>>) attributes {dimension_semantics = [#tpu.dimension_semantics<parallel>], iteration_bounds = array<i64: 1>, scalar_prefetch = 0 : i64, scratch_operands = 0 : i64, tpu.core_type = #tpu.core_type<tc>, window_params = [{transform_indices = @transform_0, window_bounds = array<i64: 8, 988>}, {pipeline_mode = #tpu.pipeline_mode<synchronous>, transform_indices = @transform_1, window_bounds = array<i64: 988, 304>}, {pipeline_mode = #tpu.pipeline_mode<synchronous>, transform_indices = @transform_2, window_bounds = array<i64: 1, 304>}, {pipeline_mode = #tpu.pipeline_mode<synchronous>, transform_indices = @transform_3, window_bounds = array<i64: 304, 608>}, {pipeline_mode = #tpu.pipeline_mode<synchronous>, transform_indices = @transform_4, window_bounds = array<i64: 1, 608>}, {pipeline_mode = #tpu.pipeline_mode<synchronous>, transform_indices = @transform_5, window_bounds = array<i64: 608, 128>}, {pipeline_mode = #tpu.pipeline_mode<synchronous>, transform_indices = @transform_6, window_bounds = array<i64: 1, 128>}, {transform_indices = @transform_7, window_bounds = array<i64: 8, 128>}]} {
    %c0 = arith.constant 0 : index
    %c0_0 = arith.constant 0 : index
    %0 = vector.load %arg1[%c0, %c0_0] : memref<8x988xbf16, #tpu.memory_space<vmem>>, vector<8x988xbf16>
    %c0_1 = arith.constant 0 : index
    %c0_2 = arith.constant 0 : index
    %1 = vector.load %arg2[%c0_1, %c0_2] : memref<988x304xbf16, #tpu.memory_space<vmem>>, vector<988x304xbf16>
    %cst = arith.constant dense<0.000000e+00> : vector<8x304xf32>
    %2 = tpu.matmul %0, %1, %cst {dimension_numbers = #tpu.dot_dimension_numbers<[1], [0], [0], [1], [0, 0, 1, 1], [], []>} : vector<8x988xbf16>, vector<988x304xbf16>, vector<8x304xf32> -> vector<8x304xf32>
    %c0_3 = arith.constant 0 : index
    %c0_4 = arith.constant 0 : index
    %3 = vector.load %arg3[%c0_3, %c0_4] : memref<1x304xf32, #tpu.memory_space<vmem>>, vector<1x304xf32>
    %4 = vector.broadcast %3 : vector<1x304xf32> to vector<8x304xf32>
    %5 = arith.addf %2, %4 : vector<8x304xf32>
    %cst_5 = arith.constant 0.000000e+00 : f32
    %6 = vector.broadcast %cst_5 : f32 to vector<8x304xf32>
    %7 = arith.maximumf %5, %6 : vector<8x304xf32>
    %8 = arith.truncf %7 : vector<8x304xf32> to vector<8x304xbf16>
    %c0_6 = arith.constant 0 : index
    %c0_7 = arith.constant 0 : index
    %9 = vector.load %arg4[%c0_6, %c0_7] : memref<304x608xbf16, #tpu.memory_space<vmem>>, vector<304x608xbf16>
    %cst_8 = arith.constant dense<0.000000e+00> : vector<8x608xf32>
    %10 = tpu.matmul %8, %9, %cst_8 {dimension_numbers = #tpu.dot_dimension_numbers<[1], [0], [0], [1], [0, 0, 1, 1], [], []>} : vector<8x304xbf16>, vector<304x608xbf16>, vector<8x608xf32> -> vector<8x608xf32>
    %c0_9 = arith.constant 0 : index
    %c0_10 = arith.constant 0 : index
    %11 = vector.load %arg5[%c0_9, %c0_10] : memref<1x608xf32, #tpu.memory_space<vmem>>, vector<1x608xf32>
    %12 = vector.broadcast %11 : vector<1x608xf32> to vector<8x608xf32>
    %13 = arith.addf %10, %12 : vector<8x608xf32>
    %cst_11 = arith.constant 0.000000e+00 : f32
    %14 = vector.broadcast %cst_11 : f32 to vector<8x608xf32>
    %15 = arith.maximumf %13, %14 : vector<8x608xf32>
    %16 = arith.truncf %15 : vector<8x608xf32> to vector<8x608xbf16>
    %c0_12 = arith.constant 0 : index
    %c0_13 = arith.constant 0 : index
    %17 = vector.load %arg6[%c0_12, %c0_13] : memref<608x128xbf16, #tpu.memory_space<vmem>>, vector<608x128xbf16>
    %cst_14 = arith.constant dense<0.000000e+00> : vector<8x128xf32>
    %18 = tpu.matmul %16, %17, %cst_14 {dimension_numbers = #tpu.dot_dimension_numbers<[1], [0], [0], [1], [0, 0, 1, 1], [], []>} : vector<8x608xbf16>, vector<608x128xbf16>, vector<8x128xf32> -> vector<8x128xf32>
    %c0_15 = arith.constant 0 : index
    %c0_16 = arith.constant 0 : index
    %19 = vector.load %arg7[%c0_15, %c0_16] : memref<1x128xf32, #tpu.memory_space<vmem>>, vector<1x128xf32>
    %20 = vector.broadcast %19 : vector<1x128xf32> to vector<8x128xf32>
    %21 = arith.addf %18, %20 : vector<8x128xf32>
    %c0_17 = arith.constant 0 : index
    %c0_18 = arith.constant 0 : index
    %22 = vector.load %arg8[%c0_17, %c0_18] : memref<8x128xf32, #tpu.memory_space<vmem>>, vector<8x128xf32>
    tpu.vector_store %arg8[%c0_17, %c0_18], %21 {strides = array<i32>} : memref<8x128xf32, #tpu.memory_space<vmem>>, vector<8x128xf32>,
    return
  }
  func.func @transform_0(%arg0: i32) -> (i32, i32) {
    %c0_i32 = arith.constant 0 : i32
    %c0_i32_0 = arith.constant 0 : i32
    return %arg0, %c0_i32 : i32, i32
  }
  func.func @transform_1(%arg0: i32) -> (i32, i32) {
    %c0_i32 = arith.constant 0 : i32
    %c0_i32_0 = arith.constant 0 : i32
    %c0_i32_1 = arith.constant 0 : i32
    return %c0_i32, %c0_i32_0 : i32, i32
  }
  func.func @transform_2(%arg0: i32) -> (i32, i32) {
    %c0_i32 = arith.constant 0 : i32
    %c0_i32_0 = arith.constant 0 : i32
    %c0_i32_1 = arith.constant 0 : i32
    return %c0_i32, %c0_i32_0 : i32, i32
  }
  func.func @transform_3(%arg0: i32) -> (i32, i32) {
    %c0_i32 = arith.constant 0 : i32
    %c0_i32_0 = arith.constant 0 : i32
    %c0_i32_1 = arith.constant 0 : i32
    return %c0_i32, %c0_i32_0 : i32, i32
  }
  func.func @transform_4(%arg0: i32) -> (i32, i32) {
    %c0_i32 = arith.constant 0 : i32
    %c0_i32_0 = arith.constant 0 : i32
    %c0_i32_1 = arith.constant 0 : i32
    return %c0_i32, %c0_i32_0 : i32, i32
  }
  func.func @transform_5(%arg0: i32) -> (i32, i32) {
    %c0_i32 = arith.constant 0 : i32
    %c0_i32_0 = arith.constant 0 : i32
    %c0_i32_1 = arith.constant 0 : i32
    return %c0_i32, %c0_i32_0 : i32, i32
  }
  func.func @transform_6(%arg0: i32) -> (i32, i32) {
    %c0_i32 = arith.constant 0 : i32
    %c0_i32_0 = arith.constant 0 : i32
    %c0_i32_1 = arith.constant 0 : i32
    return %c0_i32, %c0_i32_0 : i32, i32
  }
  func.func @transform_7(%arg0: i32) -> (i32, i32) {
    %c0_i32 = arith.constant 0 : i32
    %c0_i32_0 = arith.constant 0 : i32
    return %arg0, %c0_i32 : i32, i32
  }
}

</mosaic_0001>

<llo_original>
// kernel: tpu_custom_call.1
$region0: #{tpu_custom_call.1}
  #allocation0 [shape = 'u32[]', space=smem, size = 0x4, offset = 0x4, fixed_abs, tag = 'smem constant byte address 0x4 - core index']
  #allocation1 [shape = 'u32[144,128]{1,0:T(1,128)}', space=vmem, size = 0x12000, scoped, tag = 'internal scratch']
  %s0 = inlined_call_operand.vmem [shape: bf16[8,988], index: 0, kind: input, shape index: {}]
  %s1 = inlined_call_operand.vmem [shape: bf16[988,304], index: 1, kind: input, shape index: {}]
  %s2 = inlined_call_operand.vmem [shape: f32[1,304], index: 2, kind: input, shape index: {}]
  %s3 = inlined_call_operand.vmem [shape: bf16[304,608], index: 3, kind: input, shape index: {}]
  %s4 = inlined_call_operand.vmem [shape: f32[1,608], index: 4, kind: input, shape index: {}]
  %s5 = inlined_call_operand.vmem [shape: bf16[608,128], index: 5, kind: input, shape index: {}]
  %s6 = inlined_call_operand.vmem [shape: f32[1,128], index: 6, kind: input, shape index: {}]
  %s7 = inlined_call_operand.hbm [shape: f32[8,128], index: 7, kind: output, shape index: {}]
  %s8 = sld [smem:[#allocation0]]
  $region38: #{tpu_custom_call.1} parent=0
    _
  %s10 = ssub.s32 1, %s8
  %s11 = scalar_select 0, %s10, %s8
  $region1: #{tpu_custom_call.1} parent=0
    #allocation2 [shape = 'u8[4096]{0}', space=vmem, size = 0x1000, scoped, tag = 'output window, operand 0, single buffered']
    #allocation3 [shape = 's32[1]{0}', space=sflag, size = 0x4, scoped, tag = 'scoped memory for tpu_custom_call.1']
    %12 = vsyncpa [#allocation3], 0
    // Predicated region
    $region2: #{tpu_custom_call.1} parent=1 // pred_check
      _
    $region3: #{tpu_custom_call.1} parent=1 // pred_check_branch
      %14 = sbr.rel (0) target = $region5
    $region4: #{tpu_custom_call.1} parent=1 // pred_region
      _
    $region5: #{tpu_custom_call.1} parent=1 // pred_fallthru
      _
    // Predicated region
    $region6: #{tpu_custom_call.1} parent=1 // pred_check
      _
    $region7: #{tpu_custom_call.1} parent=1 // pred_check_branch
      %16 = sbr.rel (0) target = $region9
    $region8: #{tpu_custom_call.1} parent=1 // pred_region
      _
    $region9: #{tpu_custom_call.1} parent=1 // pred_fallthru
      _
    // Predicated region
    $region10: #{tpu_custom_call.1} parent=1 // pred_check
      _
    $region11: #{tpu_custom_call.1} parent=1 // pred_check_branch
      %18 = sbr.rel (0) target = $region13
    $region12: #{tpu_custom_call.1} parent=1 // pred_region
      _
    $region13: #{tpu_custom_call.1} parent=1 // pred_fallthru
      _
    // Predicated region
    $region14: #{tpu_custom_call.1} parent=1 // pred_check
      _
    $region15: #{tpu_custom_call.1} parent=1 // pred_check_branch
      %20 = sbr.rel (0) target = $region17
    $region16: #{tpu_custom_call.1} parent=1 // pred_region
      _
    $region17: #{tpu_custom_call.1} parent=1 // pred_fallthru
      _
    // Predicated region
    $region18: #{tpu_custom_call.1} parent=1 // pred_check
      _
    $region19: #{tpu_custom_call.1} parent=1 // pred_check_branch
      %22 = sbr.rel (0) target = $region21
    $region20: #{tpu_custom_call.1} parent=1 // pred_region
      _
    $region21: #{tpu_custom_call.1} parent=1 // pred_fallthru
      _
    // Predicated region
    $region22: #{tpu_custom_call.1} parent=1 // pred_check
      _
    $region23: #{tpu_custom_call.1} parent=1 // pred_check_branch
      %24 = sbr.rel (0) target = $region25
    $region24: #{tpu_custom_call.1} parent=1 // pred_region
      _
    $region25: #{tpu_custom_call.1} parent=1 // pred_fallthru
      _
    // Predicated region
    $region26: #{tpu_custom_call.1} parent=1 // pred_check
      _
    $region27: #{tpu_custom_call.1} parent=1 // pred_check_branch
      %26 = sbr.rel (0) target = $region29
    $region28: #{tpu_custom_call.1} parent=1 // pred_region
      _
    $region29: #{tpu_custom_call.1} parent=1 // pred_fallthru
      _
    %v28 = vld [vmem:[%s0] sm:$0xff]
    %v29 = vld [vmem:[%s0 + $0x8] sm:$0xff]
    %v30 = vld [vmem:[%s0 + $0x10] sm:$0xff]
    %v31 = vld [vmem:[%s0 + $0x18] sm:$0xff]
    %v32 = vld [vmem:[%s1] sm:$0xff]
    %v33 = vld [vmem:[%s1 + $0x8] sm:$0xf]
    %v34 = vld [vmem:[%s1 + $0xc] sm:$0xff]
    %v35 = vld [vmem:[%s1 + $0x14] sm:$0xf]
    %v36 = vld [vmem:[%s1 + $0x18] sm:$0xff]
    %v37 = vld [vmem:[%s1 + $0x20] sm:$0xf]
    %v38 = vld [vmem:[%s1 + $0x24] sm:$0xff]
    %v39 = vld [vmem:[%s1 + $0x2c] sm:$0xf]
    %v40 = vld [vmem:[%s1 + $0x30] sm:$0xff]
    %v41 = vld [vmem:[%s1 + $0x38] sm:$0xf]
    %v42 = vld [vmem:[%s1 + $0x3c] sm:$0xff]
    %v43 = vld [vmem:[%s1 + $0x44] sm:$0xf]
    %v44 = vld [vmem:[%s1 + $0x48] sm:$0xff]
    %v45 = vld [vmem:[%s1 + $0x50] sm:$0xf]
    %v46 = vld [vmem:[%s1 + $0x54] sm:$0xff]
    %v47 = vld [vmem:[%s1 + $0x5c] sm:$0xf]
    %v48 = vld [vmem:[%s1 + $0x60] sm:$0xff]
    %v49 = vld [vmem:[%s1 + $0x68] sm:$0xf]
    %v50 = vld [vmem:[%s1 + $0x6c] sm:$0xff]
    %v51 = vld [vmem:[%s1 + $0x74] sm:$0xf]
    %v52 = vld [vmem:[%s1 + $0x78] sm:$0xff]
    %v53 = vld [vmem:[%s1 + $0x80] sm:$0xf]
    %v54 = vld [vmem:[%s1 + $0x84] sm:$0xff]
    %v55 = vld [vmem:[%s1 + $0x8c] sm:$0xf]
    %v56 = vld [vmem:[%s1 + $0x90] sm:$0xff]
    %v57 = vld [vmem:[%s1 + $0x98] sm:$0xf]
    %v58 = vld [vmem:[%s1 + $0x9c] sm:$0xff]
    %v59 = vld [vmem:[%s1 + $0xa4] sm:$0xf]
    %v60 = vld [vmem:[%s1 + $0xa8] sm:$0xff]
    %v61 = vld [vmem:[%s1 + $0xb0] sm:$0xf]
    %v62 = vld [vmem:[%s1 + $0xb4] sm:$0xff]
    %v63 = vld [vmem:[%s1 + $0xbc] sm:$0xf]
    %v64 = vld [vmem:[%s1 + $0xc0] sm:$0xff]
    %v65 = vld [vmem:[%s1 + $0xc8] sm:$0xf]
    %v66 = vld [vmem:[%s1 + $0xcc] sm:$0xff]
    %v67 = vld [vmem:[%s1 + $0xd4] sm:$0xf]
    %v68 = vld [vmem:[%s1 + $0xd8] sm:$0xff]
    %v69 = vld [vmem:[%s1 + $0xe0] sm:$0xf]
    %v70 = vld [vmem:[%s1 + $0xe4] sm:$0xff]
    %v71 = vld [vmem:[%s1 + $0xec] sm:$0xf]
    %v72 = vld [vmem:[%s1 + $0xf0] sm:$0xff]
    %v73 = vld [vmem:[%s1 + $0xf8] sm:$0xf]
    %v74 = vld [vmem:[%s1 + $0xfc] sm:$0xff]
    %v75 = vld [vmem:[%s1 + $0x104] sm:$0xf]
    %v76 = vld [vmem:[%s1 + $0x108] sm:$0xff]
    %v77 = vld [vmem:[%s1 + $0x110] sm:$0xf]
    %v78 = vld [vmem:[%s1 + $0x114] sm:$0xff]
    %v79 = vld [vmem:[%s1 + $0x11c] sm:$0xf]
    %v80 = vld [vmem:[%s1 + $0x120] sm:$0xff]
    %v81 = vld [vmem:[%s1 + $0x128] sm:$0xf]
    %v82 = vld [vmem:[%s1 + $0x12c] sm:$0xff]
    %v83 = vld [vmem:[%s1 + $0x134] sm:$0xf]
    %v84 = vld [vmem:[%s1 + $0x138] sm:$0xff]
    %v85 = vld [vmem:[%s1 + $0x140] sm:$0xf]
    %v86 = vld [vmem:[%s1 + $0x144] sm:$0xff]
    %v87 = vld [vmem:[%s1 + $0x14c] sm:$0xf]
    %v88 = vld [vmem:[%s1 + $0x150] sm:$0xff]
    %v89 = vld [vmem:[%s1 + $0x158] sm:$0xf]
    %v90 = vld [vmem:[%s1 + $0x15c] sm:$0xff]
    %v91 = vld [vmem:[%s1 + $0x164] sm:$0xf]
    %v92 = vld [vmem:[%s1 + $0x168] sm:$0xff]
    %v93 = vld [vmem:[%s1 + $0x170] sm:$0xf]
    %v94 = vld [vmem:[%s1 + $0x174] sm:$0xff]
    %v95 = vld [vmem:[%s1 + $0x17c] sm:$0xf]
    %v96 = vld [vmem:[%s1 + $0x180] sm:$0xff]
    %v97 = vld [vmem:[%s1 + $0x188] sm:$0xf]
    %v98 = vld [vmem:[%s1 + $0x18c] sm:$0xff]
    %v99 = vld [vmem:[%s1 + $0x194] sm:$0xf]
    %v100 = vld [vmem:[%s1 + $0x198] sm:$0xff]
    %v101 = vld [vmem:[%s1 + $0x1a0] sm:$0xf]
    %v102 = vld [vmem:[%s1 + $0x1a4] sm:$0xff]
    %v103 = vld [vmem:[%s1 + $0x1ac] sm:$0xf]
    %v104 = vld [vmem:[%s1 + $0x1b0] sm:$0xff]
    %v105 = vld [vmem:[%s1 + $0x1b8] sm:$0xf]
    %v106 = vld [vmem:[%s1 + $0x1bc] sm:$0xff]
    %v107 = vld [vmem:[%s1 + $0x1c4] sm:$0xf]
    %v108 = vld [vmem:[%s1 + $0x1c8] sm:$0xff]
    %v109 = vld [vmem:[%s1 + $0x1d0] sm:$0xf]
    %v110 = vld [vmem:[%s1 + $0x1d4] sm:$0xff]
    %v111 = vld [vmem:[%s1 + $0x1dc] sm:$0xf]
    %v112 = vld [vmem:[%s1 + $0x1e0] sm:$0xff]
    %v113 = vld [vmem:[%s1 + $0x1e8] sm:$0xf]
    %v114 = vld [vmem:[%s1 + $0x1ec] sm:$0xff]
    %v115 = vld [vmem:[%s1 + $0x1f4] sm:$0xf]
    %v116 = vld [vmem:[%s1 + $0x1f8] sm:$0xff]
    %v117 = vld [vmem:[%s1 + $0x200] sm:$0xf]
    %v118 = vld [vmem:[%s1 + $0x204] sm:$0xff]
    %v119 = vld [vmem:[%s1 + $0x20c] sm:$0xf]
    %v120 = vld [vmem:[%s1 + $0x210] sm:$0xff]
    %v121 = vld [vmem:[%s1 + $0x218] sm:$0xf]
    %v122 = vld [vmem:[%s1 + $0x21c] sm:$0xff]
    %v123 = vld [vmem:[%s1 + $0x224] sm:$0xf]
    %v124 = vld [vmem:[%s1 + $0x228] sm:$0xff]
    %v125 = vld [vmem:[%s1 + $0x230] sm:$0xf]
    %v126 = vld [vmem:[%s1 + $0x234] sm:$0xff]
    %v127 = vld [vmem:[%s1 + $0x23c] sm:$0xf]
    %v128 = vld [vmem:[%s1 + $0x240] sm:$0xff]
    %v129 = vld [vmem:[%s1 + $0x248] sm:$0xf]
    %v130 = vld [vmem:[%s1 + $0x24c] sm:$0xff]
    %v131 = vld [vmem:[%s1 + $0x254] sm:$0xf]
    %v132 = vld [vmem:[%s1 + $0x258] sm:$0xff]
    %v133 = vld [vmem:[%s1 + $0x260] sm:$0xf]
    %v134 = vld [vmem:[%s1 + $0x264] sm:$0xff]
    %v135 = vld [vmem:[%s1 + $0x26c] sm:$0xf]
    %v136 = vld [vmem:[%s1 + $0x270] sm:$0xff]
    %v137 = vld [vmem:[%s1 + $0x278] sm:$0xf]
    %v138 = vld [vmem:[%s1 + $0x27c] sm:$0xff]
    %v139 = vld [vmem:[%s1 + $0x284] sm:$0xf]
    %v140 = vld [vmem:[%s1 + $0x288] sm:$0xff]
    %v141 = vld [vmem:[%s1 + $0x290] sm:$0xf]
    %v142 = vld [vmem:[%s1 + $0x294] sm:$0xff]
    %v143 = vld [vmem:[%s1 + $0x29c] sm:$0xf]
    %v144 = vld [vmem:[%s1 + $0x2a0] sm:$0xff]
    %v145 = vld [vmem:[%s1 + $0x2a8] sm:$0xf]
    %v146 = vld [vmem:[%s1 + $0x2ac] sm:$0xff]
    %v147 = vld [vmem:[%s1 + $0x2b4] sm:$0xf]
    %v148 = vld [vmem:[%s1 + $0x2b8] sm:$0xff]
    %v149 = vld [vmem:[%s1 + $0x2c0] sm:$0xf]
    %v150 = vld [vmem:[%s1 + $0x2c4] sm:$0xff]
    %v151 = vld [vmem:[%s1 + $0x2cc] sm:$0xf]
    %v152 = vld [vmem:[%s1 + $0x2d0] sm:$0xff]
    %v153 = vld [vmem:[%s1 + $0x2d8] sm:$0xf]
    %v154 = vld [vmem:[%s1 + $0x2dc] sm:$0xff]
    %v155 = vld [vmem:[%s1 + $0x2e4] sm:$0xf]
    %v156 = vld [vmem:[%s1 + $0x2e8] sm:$0xff]
    %v157 = vld [vmem:[%s1 + $0x2f0] sm:$0xf]
    %v158 = vld [vmem:[%s1 + $0x2f4] sm:$0xff]
    %v159 = vld [vmem:[%s1 + $0x2fc] sm:$0xf]
    %v160 = vld [vmem:[%s1 + $0x300] sm:$0xff]
    %v161 = vld [vmem:[%s1 + $0x308] sm:$0xf]
    %v162 = vld [vmem:[%s1 + $0x30c] sm:$0xff]
    %v163 = vld [vmem:[%s1 + $0x314] sm:$0xf]
    %v164 = vld [vmem:[%s1 + $0x318] sm:$0xff]
    %v165 = vld [vmem:[%s1 + $0x320] sm:$0xf]
    %v166 = vld [vmem:[%s1 + $0x324] sm:$0xff]
    %v167 = vld [vmem:[%s1 + $0x32c] sm:$0xf]
    %v168 = vld [vmem:[%s1 + $0x330] sm:$0xff]
    %v169 = vld [vmem:[%s1 + $0x338] sm:$0xf]
    %v170 = vld [vmem:[%s1 + $0x33c] sm:$0xff]
    %v171 = vld [vmem:[%s1 + $0x344] sm:$0xf]
    %v172 = vld [vmem:[%s1 + $0x348] sm:$0xff]
    %v173 = vld [vmem:[%s1 + $0x350] sm:$0xf]
    %v174 = vld [vmem:[%s1 + $0x354] sm:$0xff]
    %v175 = vld [vmem:[%s1 + $0x35c] sm:$0xf]
    %v176 = vld [vmem:[%s1 + $0x360] sm:$0xff]
    %v177 = vld [vmem:[%s1 + $0x368] sm:$0xf]
    %v178 = vld [vmem:[%s1 + $0x36c] sm:$0xff]
    %v179 = vld [vmem:[%s1 + $0x374] sm:$0xf]
    %v180 = vld [vmem:[%s1 + $0x378] sm:$0xff]
    %v181 = vld [vmem:[%s1 + $0x380] sm:$0xf]
    %v182 = vld [vmem:[%s1 + $0x384] sm:$0xff]
    %v183 = vld [vmem:[%s1 + $0x38c] sm:$0xf]
    %v184 = vld [vmem:[%s1 + $0x390] sm:$0xff]
    %v185 = vld [vmem:[%s1 + $0x398] sm:$0xf]
    %v186 = vld [vmem:[%s1 + $0x39c] sm:$0xff]
    %v187 = vld [vmem:[%s1 + $0x3a4] sm:$0xf]
    %v188 = vld [vmem:[%s1 + $0x3a8] sm:$0xff]
    %v189 = vld [vmem:[%s1 + $0x3b0] sm:$0xf]
    %v190 = vld [vmem:[%s1 + $0x3b4] sm:$0xff]
    %v191 = vld [vmem:[%s1 + $0x3bc] sm:$0xf]
    %v192 = vld [vmem:[%s1 + $0x3c0] sm:$0xff]
    %v193 = vld [vmem:[%s1 + $0x3c8] sm:$0xf]
    %v194 = vld [vmem:[%s1 + $0x3cc] sm:$0xff]
    %v195 = vld [vmem:[%s1 + $0x3d4] sm:$0xf]
    %v196 = vld [vmem:[%s1 + $0x3d8] sm:$0xff]
    %v197 = vld [vmem:[%s1 + $0x3e0] sm:$0xf]
    %v198 = vld [vmem:[%s1 + $0x3e4] sm:$0xff]
    %v199 = vld [vmem:[%s1 + $0x3ec] sm:$0xf]
    %v200 = vld [vmem:[%s1 + $0x3f0] sm:$0xff]
    %v201 = vld [vmem:[%s1 + $0x3f8] sm:$0xf]
    %v202 = vld [vmem:[%s1 + $0x3fc] sm:$0xff]
    %v203 = vld [vmem:[%s1 + $0x404] sm:$0xf]
    %v204 = vld [vmem:[%s1 + $0x408] sm:$0xff]
    %v205 = vld [vmem:[%s1 + $0x410] sm:$0xf]
    %v206 = vld [vmem:[%s1 + $0x414] sm:$0xff]
    %v207 = vld [vmem:[%s1 + $0x41c] sm:$0xf]
    %v208 = vld [vmem:[%s1 + $0x420] sm:$0xff]
    %v209 = vld [vmem:[%s1 + $0x428] sm:$0xf]
    %v210 = vld [vmem:[%s1 + $0x42c] sm:$0xff]
    %v211 = vld [vmem:[%s1 + $0x434] sm:$0xf]
    %v212 = vld [vmem:[%s1 + $0x438] sm:$0xff]
    %v213 = vld [vmem:[%s1 + $0x440] sm:$0xf]
    %v214 = vld [vmem:[%s1 + $0x444] sm:$0xff]
    %v215 = vld [vmem:[%s1 + $0x44c] sm:$0xf]
    %v216 = vld [vmem:[%s1 + $0x450] sm:$0xff]
    %v217 = vld [vmem:[%s1 + $0x458] sm:$0xf]
    %v218 = vld [vmem:[%s1 + $0x45c] sm:$0xff]
    %v219 = vld [vmem:[%s1 + $0x464] sm:$0xf]
    %v220 = vld [vmem:[%s1 + $0x468] sm:$0xff]
    %v221 = vld [vmem:[%s1 + $0x470] sm:$0xf]
    %v222 = vld [vmem:[%s1 + $0x474] sm:$0xff]
    %v223 = vld [vmem:[%s1 + $0x47c] sm:$0xf]
    %v224 = vld [vmem:[%s1 + $0x480] sm:$0xff]
    %v225 = vld [vmem:[%s1 + $0x488] sm:$0xf]
    %v226 = vld [vmem:[%s1 + $0x48c] sm:$0xff]
    %v227 = vld [vmem:[%s1 + $0x494] sm:$0xf]
    %v228 = vld [vmem:[%s1 + $0x498] sm:$0xff]
    %v229 = vld [vmem:[%s1 + $0x4a0] sm:$0xf]
    %v230 = vld [vmem:[%s1 + $0x4a4] sm:$0xff]
    %v231 = vld [vmem:[%s1 + $0x4ac] sm:$0xf]
    %v232 = vld [vmem:[%s1 + $0x4b0] sm:$0xff]
    %v233 = vld [vmem:[%s1 + $0x4b8] sm:$0xf]
    %v234 = vld [vmem:[%s1 + $0x4bc] sm:$0xff]
    %v235 = vld [vmem:[%s1 + $0x4c4] sm:$0xf]
    %v236 = vld [vmem:[%s1 + $0x4c8] sm:$0xff]
    %v237 = vld [vmem:[%s1 + $0x4d0] sm:$0xf]
    %v238 = vld [vmem:[%s1 + $0x4d4] sm:$0xff]
    %v239 = vld [vmem:[%s1 + $0x4dc] sm:$0xf]
    %v240 = vld [vmem:[%s1 + $0x4e0] sm:$0xff]
    %v241 = vld [vmem:[%s1 + $0x4e8] sm:$0xf]
    %v242 = vld [vmem:[%s1 + $0x4ec] sm:$0xff]
    %v243 = vld [vmem:[%s1 + $0x4f4] sm:$0xf]
    %v244 = vld [vmem:[%s1 + $0x4f8] sm:$0xff]
    %v245 = vld [vmem:[%s1 + $0x500] sm:$0xf]
    %v246 = vld [vmem:[%s1 + $0x504] sm:$0xff]
    %v247 = vld [vmem:[%s1 + $0x50c] sm:$0xf]
    %v248 = vld [vmem:[%s1 + $0x510] sm:$0xff]
    %v249 = vld [vmem:[%s1 + $0x518] sm:$0xf]
    %v250 = vld [vmem:[%s1 + $0x51c] sm:$0xff]
    %v251 = vld [vmem:[%s1 + $0x524] sm:$0xf]
    %v252 = vld [vmem:[%s1 + $0x528] sm:$0xff]
    %v253 = vld [vmem:[%s1 + $0x530] sm:$0xf]
    %v254 = vld [vmem:[%s1 + $0x534] sm:$0xff]
    %v255 = vld [vmem:[%s1 + $0x53c] sm:$0xf]
    %v256 = vld [vmem:[%s1 + $0x540] sm:$0xff]
    %v257 = vld [vmem:[%s1 + $0x548] sm:$0xf]
    %v258 = vld [vmem:[%s1 + $0x54c] sm:$0xff]
    %v259 = vld [vmem:[%s1 + $0x554] sm:$0xf]
    %v260 = vld [vmem:[%s1 + $0x558] sm:$0xff]
    %v261 = vld [vmem:[%s1 + $0x560] sm:$0xf]
    %v262 = vld [vmem:[%s1 + $0x564] sm:$0xff]
    %v263 = vld [vmem:[%s1 + $0x56c] sm:$0xf]
    %v264 = vld [vmem:[%s1 + $0x570] sm:$0xff]
    %v265 = vld [vmem:[%s1 + $0x578] sm:$0xf]
    %v266 = vld [vmem:[%s1 + $0x57c] sm:$0xff]
    %v267 = vld [vmem:[%s1 + $0x584] sm:$0xf]
    %v268 = vld [vmem:[%s1 + $0x588] sm:$0xff]
    %v269 = vld [vmem:[%s1 + $0x590] sm:$0xf]
    %v270 = vld [vmem:[%s1 + $0x594] sm:$0xff]
    %v271 = vld [vmem:[%s1 + $0x59c] sm:$0xf]
    %v272 = vld [vmem:[%s1 + $0x5a0] sm:$0xff]
    %v273 = vld [vmem:[%s1 + $0x5a8] sm:$0xf]
    %v274 = vld [vmem:[%s1 + $0x5ac] sm:$0xff]
    %v275 = vld [vmem:[%s1 + $0x5b4] sm:$0xf]
    %v276 = vld [vmem:[%s1 + $0x5b8] sm:$0xff]
    %v277 = vld [vmem:[%s1 + $0x5c0] sm:$0xf]
    %v278 = vld [vmem:[%s1 + $0x5c4] sm:$0x33]
    %v279 = vld [vmem:[%s1 + $0x5cc] sm:$0x3]
    %v280 = vld [vmem:[%s2] sm:$0x7]
    %v282 = vlaneseq
    %v283 = vshrl.u32 %v282, 7
    %v284 = vsub.s32 0, %v283
    %v285 = vrot.slane %v280, %v284
    %v286 = vlaneseq
    %v287 = vshrl.u32 %v286, 7
    %v288 = vsub.s32 1, %v287
    %v289 = vrot.slane %v280, %v288
    %v290 = vlaneseq
    %v291 = vshrl.u32 %v290, 7
    %v292 = vsub.s32 2, %v291
    %v293 = vrot.slane %v280, %v292
    %v301 = vunpack.c.l.b16 %v28
    %v302 = vunpack.c.h.b16 %v28
    %v303 = vunpack.c.l.b16 %v29
    %v304 = vunpack.c.h.b16 %v29
    %v305 = vunpack.c.l.b16 %v30
    %v306 = vunpack.c.h.b16 %v30
    %v307 = vunpack.c.l.b16 %v31
    %v308 = vunpack.c.h.b16 %v31
    %v309 = vpack.c.b16 %v301, %v301
    %v310 = vpack.c.b16 %v302, %v302
    %v311 = vpack.c.b16 %v303, %v303
    %v312 = vpack.c.b16 %v304, %v304
    %v313 = vpack.c.b16 %v305, %v305
    %v314 = vpack.c.b16 %v306, %v306
    %v315 = vpack.c.b16 %v307, %v307
    %v316 = vpack.c.b16 %v308, %v308
    %v572 = vunpack.c.l.b16 %v32
    %v573 = vunpack.c.h.b16 %v32
    %v574 = vunpack.c.l.b16 %v33
    %v575 = vunpack.c.l.b16 %v34
    %v576 = vunpack.c.h.b16 %v34
    %v577 = vunpack.c.l.b16 %v35
    %v578 = vunpack.c.l.b16 %v36
    %v579 = vunpack.c.h.b16 %v36
    %v580 = vunpack.c.l.b16 %v37
    %v581 = vunpack.c.l.b16 %v38
    %v582 = vunpack.c.h.b16 %v38
    %v583 = vunpack.c.l.b16 %v39
    %v584 = vunpack.c.l.b16 %v40
    %v585 = vunpack.c.h.b16 %v40
    %v586 = vunpack.c.l.b16 %v41
    %v587 = vunpack.c.l.b16 %v42
    %v588 = vunpack.c.h.b16 %v42
    %v589 = vunpack.c.l.b16 %v43
    %v590 = vunpack.c.l.b16 %v44
    %v591 = vunpack.c.h.b16 %v44
    %v592 = vunpack.c.l.b16 %v45
    %v593 = vunpack.c.l.b16 %v46
    %v594 = vunpack.c.h.b16 %v46
    %v595 = vunpack.c.l.b16 %v47
    %v596 = vunpack.c.l.b16 %v48
    %v597 = vunpack.c.h.b16 %v48
    %v598 = vunpack.c.l.b16 %v49
    %v599 = vunpack.c.l.b16 %v50
    %v600 = vunpack.c.h.b16 %v50
    %v601 = vunpack.c.l.b16 %v51
    %v602 = vunpack.c.l.b16 %v52
    %v603 = vunpack.c.h.b16 %v52
    %v604 = vunpack.c.l.b16 %v53
    %v605 = vunpack.c.l.b16 %v54
    %v606 = vunpack.c.h.b16 %v54
    %v607 = vunpack.c.l.b16 %v55
    %v608 = vunpack.c.l.b16 %v56
    %v609 = vunpack.c.h.b16 %v56
    %v610 = vunpack.c.l.b16 %v57
    %v611 = vunpack.c.l.b16 %v58
    %v612 = vunpack.c.h.b16 %v58
    %v613 = vunpack.c.l.b16 %v59
    %v614 = vunpack.c.l.b16 %v60
    %v615 = vunpack.c.h.b16 %v60
    %v616 = vunpack.c.l.b16 %v61
    %v617 = vunpack.c.l.b16 %v62
    %v618 = vunpack.c.h.b16 %v62
    %v619 = vunpack.c.l.b16 %v63
    %v620 = vunpack.c.l.b16 %v64
    %v621 = vunpack.c.h.b16 %v64
    %v622 = vunpack.c.l.b16 %v65
    %v623 = vunpack.c.l.b16 %v66
    %v624 = vunpack.c.h.b16 %v66
    %v625 = vunpack.c.l.b16 %v67
    %v626 = vunpack.c.l.b16 %v68
    %v627 = vunpack.c.h.b16 %v68
    %v628 = vunpack.c.l.b16 %v69
    %v629 = vunpack.c.l.b16 %v70
    %v630 = vunpack.c.h.b16 %v70
    %v631 = vunpack.c.l.b16 %v71
    %v632 = vunpack.c.l.b16 %v72
    %v633 = vunpack.c.h.b16 %v72
    %v634 = vunpack.c.l.b16 %v73
    %v635 = vunpack.c.l.b16 %v74
    %v636 = vunpack.c.h.b16 %v74
    %v637 = vunpack.c.l.b16 %v75
    %v638 = vunpack.c.l.b16 %v76
    %v639 = vunpack.c.h.b16 %v76
    %v640 = vunpack.c.l.b16 %v77
    %v641 = vunpack.c.l.b16 %v78
    %v642 = vunpack.c.h.b16 %v78
    %v643 = vunpack.c.l.b16 %v79
    %v644 = vunpack.c.l.b16 %v80
    %v645 = vunpack.c.h.b16 %v80
    %v646 = vunpack.c.l.b16 %v81
    %v647 = vunpack.c.l.b16 %v82
    %v648 = vunpack.c.h.b16 %v82
    %v649 = vunpack.c.l.b16 %v83
    %v650 = vunpack.c.l.b16 %v84
    %v651 = vunpack.c.h.b16 %v84
    %v652 = vunpack.c.l.b16 %v85
    %v653 = vunpack.c.l.b16 %v86
    %v654 = vunpack.c.h.b16 %v86
    %v655 = vunpack.c.l.b16 %v87
    %v656 = vunpack.c.l.b16 %v88
    %v657 = vunpack.c.h.b16 %v88
    %v658 = vunpack.c.l.b16 %v89
    %v659 = vunpack.c.l.b16 %v90
    %v660 = vunpack.c.h.b16 %v90
    %v661 = vunpack.c.l.b16 %v91
    %v662 = vunpack.c.l.b16 %v92
    %v663 = vunpack.c.h.b16 %v92
    %v664 = vunpack.c.l.b16 %v93
    %v665 = vunpack.c.l.b16 %v94
    %v666 = vunpack.c.h.b16 %v94
    %v667 = vunpack.c.l.b16 %v95
    %v668 = vunpack.c.l.b16 %v96
    %v669 = vunpack.c.h.b16 %v96
    %v670 = vunpack.c.l.b16 %v97
    %v671 = vunpack.c.l.b16 %v98
    %v672 = vunpack.c.h.b16 %v98
    %v673 = vunpack.c.l.b16 %v99
    %v674 = vunpack.c.l.b16 %v100
    %v675 = vunpack.c.h.b16 %v100
    %v676 = vunpack.c.l.b16 %v101
    %v677 = vunpack.c.l.b16 %v102
    %v678 = vunpack.c.h.b16 %v102
    %v679 = vunpack.c.l.b16 %v103
    %v680 = vunpack.c.l.b16 %v104
    %v681 = vunpack.c.h.b16 %v104
    %v682 = vunpack.c.l.b16 %v105
    %v683 = vunpack.c.l.b16 %v106
    %v684 = vunpack.c.h.b16 %v106
    %v685 = vunpack.c.l.b16 %v107
    %v686 = vunpack.c.l.b16 %v108
    %v687 = vunpack.c.h.b16 %v108
    %v688 = vunpack.c.l.b16 %v109
    %v689 = vunpack.c.l.b16 %v110
    %v690 = vunpack.c.h.b16 %v110
    %v691 = vunpack.c.l.b16 %v111
    %v692 = vunpack.c.l.b16 %v112
    %v693 = vunpack.c.h.b16 %v112
    %v694 = vunpack.c.l.b16 %v113
    %v695 = vunpack.c.l.b16 %v114
    %v696 = vunpack.c.h.b16 %v114
    %v697 = vunpack.c.l.b16 %v115
    %v698 = vunpack.c.l.b16 %v116
    %v699 = vunpack.c.h.b16 %v116
    %v700 = vunpack.c.l.b16 %v117
    %v701 = vunpack.c.l.b16 %v118
    %v702 = vunpack.c.h.b16 %v118
    %v703 = vunpack.c.l.b16 %v119
    %v704 = vunpack.c.l.b16 %v120
    %v705 = vunpack.c.h.b16 %v120
    %v706 = vunpack.c.l.b16 %v121
    %v707 = vunpack.c.l.b16 %v122
    %v708 = vunpack.c.h.b16 %v122
    %v709 = vunpack.c.l.b16 %v123
    %v710 = vunpack.c.l.b16 %v124
    %v711 = vunpack.c.h.b16 %v124
    %v712 = vunpack.c.l.b16 %v125
    %v713 = vunpack.c.l.b16 %v126
    %v714 = vunpack.c.h.b16 %v126
    %v715 = vunpack.c.l.b16 %v127
    %v716 = vunpack.c.l.b16 %v128
    %v717 = vunpack.c.h.b16 %v128
    %v718 = vunpack.c.l.b16 %v129
    %v719 = vunpack.c.l.b16 %v130
    %v720 = vunpack.c.h.b16 %v130
    %v721 = vunpack.c.l.b16 %v131
    %v722 = vunpack.c.l.b16 %v132
    %v723 = vunpack.c.h.b16 %v132
    %v724 = vunpack.c.l.b16 %v133
    %v725 = vunpack.c.l.b16 %v134
    %v726 = vunpack.c.h.b16 %v134
    %v727 = vunpack.c.l.b16 %v135
    %v728 = vunpack.c.l.b16 %v136
    %v729 = vunpack.c.h.b16 %v136
    %v730 = vunpack.c.l.b16 %v137
    %v731 = vunpack.c.l.b16 %v138
    %v732 = vunpack.c.h.b16 %v138
    %v733 = vunpack.c.l.b16 %v139
    %v734 = vunpack.c.l.b16 %v140
    %v735 = vunpack.c.h.b16 %v140
    %v736 = vunpack.c.l.b16 %v141
    %v737 = vunpack.c.l.b16 %v142
    %v738 = vunpack.c.h.b16 %v142
    %v739 = vunpack.c.l.b16 %v143
    %v740 = vunpack.c.l.b16 %v144
    %v741 = vunpack.c.h.b16 %v144
    %v742 = vunpack.c.l.b16 %v145
    %v743 = vunpack.c.l.b16 %v146
    %v744 = vunpack.c.h.b16 %v146
    %v745 = vunpack.c.l.b16 %v147
    %v746 = vunpack.c.l.b16 %v148
    %v747 = vunpack.c.h.b16 %v148
    %v748 = vunpack.c.l.b16 %v149
    %v749 = vunpack.c.l.b16 %v150
    %v750 = vunpack.c.h.b16 %v150
    %v751 = vunpack.c.l.b16 %v151
    %v752 = vunpack.c.l.b16 %v152
    %v753 = vunpack.c.h.b16 %v152
    %v754 = vunpack.c.l.b16 %v153
    %v755 = vunpack.c.l.b16 %v154
    %v756 = vunpack.c.h.b16 %v154
    %v757 = vunpack.c.l.b16 %v155
    %v758 = vunpack.c.l.b16 %v156
    %v759 = vunpack.c.h.b16 %v156
    %v760 = vunpack.c.l.b16 %v157
    %v761 = vunpack.c.l.b16 %v158
    %v762 = vunpack.c.h.b16 %v158
    %v763 = vunpack.c.l.b16 %v159
    %v764 = vunpack.c.l.b16 %v160
    %v765 = vunpack.c.h.b16 %v160
    %v766 = vunpack.c.l.b16 %v161
    %v767 = vunpack.c.l.b16 %v162
    %v768 = vunpack.c.h.b16 %v162
    %v769 = vunpack.c.l.b16 %v163
    %v770 = vunpack.c.l.b16 %v164
    %v771 = vunpack.c.h.b16 %v164
    %v772 = vunpack.c.l.b16 %v165
    %v773 = vunpack.c.l.b16 %v166
    %v774 = vunpack.c.h.b16 %v166
    %v775 = vunpack.c.l.b16 %v167
    %v776 = vunpack.c.l.b16 %v168
    %v777 = vunpack.c.h.b16 %v168
    %v778 = vunpack.c.l.b16 %v169
    %v779 = vunpack.c.l.b16 %v170
    %v780 = vunpack.c.h.b16 %v170
    %v781 = vunpack.c.l.b16 %v171
    %v782 = vunpack.c.l.b16 %v172
    %v783 = vunpack.c.h.b16 %v172
    %v784 = vunpack.c.l.b16 %v173
    %v785 = vunpack.c.l.b16 %v174
    %v786 = vunpack.c.h.b16 %v174
    %v787 = vunpack.c.l.b16 %v175
    %v788 = vunpack.c.l.b16 %v176
    %v789 = vunpack.c.h.b16 %v176
    %v790 = vunpack.c.l.b16 %v177
    %v791 = vunpack.c.l.b16 %v178
    %v792 = vunpack.c.h.b16 %v178
    %v793 = vunpack.c.l.b16 %v179
    %v794 = vunpack.c.l.b16 %v180
    %v795 = vunpack.c.h.b16 %v180
    %v796 = vunpack.c.l.b16 %v181
    %v797 = vunpack.c.l.b16 %v182
    %v798 = vunpack.c.h.b16 %v182
    %v799 = vunpack.c.l.b16 %v183
    %v800 = vunpack.c.l.b16 %v184
    %v801 = vunpack.c.h.b16 %v184
    %v802 = vunpack.c.l.b16 %v185
    %v803 = vunpack.c.l.b16 %v186
    %v804 = vunpack.c.h.b16 %v186
    %v805 = vunpack.c.l.b16 %v187
    %v806 = vunpack.c.l.b16 %v188
    %v807 = vunpack.c.h.b16 %v188
    %v808 = vunpack.c.l.b16 %v189
    %v809 = vunpack.c.l.b16 %v190
    %v810 = vunpack.c.h.b16 %v190
    %v811 = vunpack.c.l.b16 %v191
    %v812 = vunpack.c.l.b16 %v192
    %v813 = vunpack.c.h.b16 %v192
    %v814 = vunpack.c.l.b16 %v193
    %v815 = vunpack.c.l.b16 %v194
    %v816 = vunpack.c.h.b16 %v194
    %v817 = vunpack.c.l.b16 %v195
    %v818 = vunpack.c.l.b16 %v196
    %v819 = vunpack.c.h.b16 %v196
    %v820 = vunpack.c.l.b16 %v197
    %v821 = vunpack.c.l.b16 %v198
    %v822 = vunpack.c.h.b16 %v198
    %v823 = vunpack.c.l.b16 %v199
    %v824 = vunpack.c.l.b16 %v200
    %v825 = vunpack.c.h.b16 %v200
    %v826 = vunpack.c.l.b16 %v201
    %v827 = vunpack.c.l.b16 %v202
    %v828 = vunpack.c.h.b16 %v202
    %v829 = vunpack.c.l.b16 %v203
    %v830 = vunpack.c.l.b16 %v204
    %v831 = vunpack.c.h.b16 %v204
    %v832 = vunpack.c.l.b16 %v205
    %v833 = vunpack.c.l.b16 %v206
    %v834 = vunpack.c.h.b16 %v206
    %v835 = vunpack.c.l.b16 %v207
    %v836 = vunpack.c.l.b16 %v208
    %v837 = vunpack.c.h.b16 %v208
    %v838 = vunpack.c.l.b16 %v209
    %v839 = vunpack.c.l.b16 %v210
    %v840 = vunpack.c.h.b16 %v210
    %v841 = vunpack.c.l.b16 %v211
    %v842 = vunpack.c.l.b16 %v212
    %v843 = vunpack.c.h.b16 %v212
    %v844 = vunpack.c.l.b16 %v213
    %v845 = vunpack.c.l.b16 %v214
    %v846 = vunpack.c.h.b16 %v214
    %v847 = vunpack.c.l.b16 %v215
    %v848 = vunpack.c.l.b16 %v216
    %v849 = vunpack.c.h.b16 %v216
    %v850 = vunpack.c.l.b16 %v217
    %v851 = vunpack.c.l.b16 %v218
    %v852 = vunpack.c.h.b16 %v218
    %v853 = vunpack.c.l.b16 %v219
    %v854 = vunpack.c.l.b16 %v220
    %v855 = vunpack.c.h.b16 %v220
    %v856 = vunpack.c.l.b16 %v221
    %v857 = vunpack.c.l.b16 %v222
    %v858 = vunpack.c.h.b16 %v222
    %v859 = vunpack.c.l.b16 %v223
    %v860 = vunpack.c.l.b16 %v224
    %v861 = vunpack.c.h.b16 %v224
    %v862 = vunpack.c.l.b16 %v225
    %v863 = vunpack.c.l.b16 %v226
    %v864 = vunpack.c.h.b16 %v226
    %v865 = vunpack.c.l.b16 %v227
    %v866 = vunpack.c.l.b16 %v228
    %v867 = vunpack.c.h.b16 %v228
    %v868 = vunpack.c.l.b16 %v229
    %v869 = vunpack.c.l.b16 %v230
    %v870 = vunpack.c.h.b16 %v230
    %v871 = vunpack.c.l.b16 %v231
    %v872 = vunpack.c.l.b16 %v232
    %v873 = vunpack.c.h.b16 %v232
    %v874 = vunpack.c.l.b16 %v233
    %v875 = vunpack.c.l.b16 %v234
    %v876 = vunpack.c.h.b16 %v234
    %v877 = vunpack.c.l.b16 %v235
    %v878 = vunpack.c.l.b16 %v236
    %v879 = vunpack.c.h.b16 %v236
    %v880 = vunpack.c.l.b16 %v237
    %v881 = vunpack.c.l.b16 %v238
    %v882 = vunpack.c.h.b16 %v238
    %v883 = vunpack.c.l.b16 %v239
    %v884 = vunpack.c.l.b16 %v240
    %v885 = vunpack.c.h.b16 %v240
    %v886 = vunpack.c.l.b16 %v241
    %v887 = vunpack.c.l.b16 %v242
    %v888 = vunpack.c.h.b16 %v242
    %v889 = vunpack.c.l.b16 %v243
    %v890 = vunpack.c.l.b16 %v244
    %v891 = vunpack.c.h.b16 %v244
    %v892 = vunpack.c.l.b16 %v245
    %v893 = vunpack.c.l.b16 %v246
    %v894 = vunpack.c.h.b16 %v246
    %v895 = vunpack.c.l.b16 %v247
    %v896 = vunpack.c.l.b16 %v248
    %v897 = vunpack.c.h.b16 %v248
    %v898 = vunpack.c.l.b16 %v249
    %v899 = vunpack.c.l.b16 %v250
    %v900 = vunpack.c.h.b16 %v250
    %v901 = vunpack.c.l.b16 %v251
    %v902 = vunpack.c.l.b16 %v252
    %v903 = vunpack.c.h.b16 %v252
    %v904 = vunpack.c.l.b16 %v253
    %v905 = vunpack.c.l.b16 %v254
    %v906 = vunpack.c.h.b16 %v254
    %v907 = vunpack.c.l.b16 %v255
    %v908 = vunpack.c.l.b16 %v256
    %v909 = vunpack.c.h.b16 %v256
    %v910 = vunpack.c.l.b16 %v257
    %v911 = vunpack.c.l.b16 %v258
    %v912 = vunpack.c.h.b16 %v258
    %v913 = vunpack.c.l.b16 %v259
    %v914 = vunpack.c.l.b16 %v260
    %v915 = vunpack.c.h.b16 %v260
    %v916 = vunpack.c.l.b16 %v261
    %v917 = vunpack.c.l.b16 %v262
    %v918 = vunpack.c.h.b16 %v262
    %v919 = vunpack.c.l.b16 %v263
    %v920 = vunpack.c.l.b16 %v264
    %v921 = vunpack.c.h.b16 %v264
    %v922 = vunpack.c.l.b16 %v265
    %v923 = vunpack.c.l.b16 %v266
    %v924 = vunpack.c.h.b16 %v266
    %v925 = vunpack.c.l.b16 %v267
    %v926 = vunpack.c.l.b16 %v268
    %v927 = vunpack.c.h.b16 %v268
    %v928 = vunpack.c.l.b16 %v269
    %v929 = vunpack.c.l.b16 %v270
    %v930 = vunpack.c.h.b16 %v270
    %v931 = vunpack.c.l.b16 %v271
    %v932 = vunpack.c.l.b16 %v272
    %v933 = vunpack.c.h.b16 %v272
    %v934 = vunpack.c.l.b16 %v273
    %v935 = vunpack.c.l.b16 %v274
    %v936 = vunpack.c.h.b16 %v274
    %v937 = vunpack.c.l.b16 %v275
    %v938 = vunpack.c.l.b16 %v276
    %v939 = vunpack.c.h.b16 %v276
    %v940 = vunpack.c.l.b16 %v277
    %v941 = vunpack.c.l.b16 %v278
    %v942 = vunpack.c.h.b16 %v278
    %v943 = vunpack.c.l.b16 %v279
    %v944 = vpack.c.b16 %v575, %v572
    %v945 = vpack.c.b16 %v576, %v573
    %v946 = vpack.c.b16 %v577, %v574
    %v947 = vpack.c.b16 %v581, %v578
    %v948 = vpack.c.b16 %v582, %v579
    %v949 = vpack.c.b16 %v583, %v580
    %v950 = vpack.c.b16 %v587, %v584
    %v951 = vpack.c.b16 %v588, %v585
    %v952 = vpack.c.b16 %v589, %v586
    %v953 = vpack.c.b16 %v593, %v590
    %v954 = vpack.c.b16 %v594, %v591
    %v955 = vpack.c.b16 %v595, %v592
    %v956 = vpack.c.b16 %v599, %v596
    %v957 = vpack.c.b16 %v600, %v597
    %v958 = vpack.c.b16 %v601, %v598
    %v959 = vpack.c.b16 %v605, %v602
    %v960 = vpack.c.b16 %v606, %v603
    %v961 = vpack.c.b16 %v607, %v604
    %v962 = vpack.c.b16 %v611, %v608
    %v963 = vpack.c.b16 %v612, %v609
    %v964 = vpack.c.b16 %v613, %v610
    %v965 = vpack.c.b16 %v617, %v614
    %v966 = vpack.c.b16 %v618, %v615
    %v967 = vpack.c.b16 %v619, %v616
    %v968 = vpack.c.b16 %v623, %v620
    %v969 = vpack.c.b16 %v624, %v621
    %v970 = vpack.c.b16 %v625, %v622
    %v971 = vpack.c.b16 %v629, %v626
    %v972 = vpack.c.b16 %v630, %v627
    %v973 = vpack.c.b16 %v631, %v628
    %v974 = vpack.c.b16 %v635, %v632
    %v975 = vpack.c.b16 %v636, %v633
    %v976 = vpack.c.b16 %v637, %v634
    %v977 = vpack.c.b16 %v641, %v638
    %v978 = vpack.c.b16 %v642, %v639
    %v979 = vpack.c.b16 %v643, %v640
    %v980 = vpack.c.b16 %v647, %v644
    %v981 = vpack.c.b16 %v648, %v645
    %v982 = vpack.c.b16 %v649, %v646
    %v983 = vpack.c.b16 %v653, %v650
    %v984 = vpack.c.b16 %v654, %v651
    %v985 = vpack.c.b16 %v655, %v652
    %v986 = vpack.c.b16 %v659, %v656
    %v987 = vpack.c.b16 %v660, %v657
    %v988 = vpack.c.b16 %v661, %v658
    %v989 = vpack.c.b16 %v665, %v662
    %v990 = vpack.c.b16 %v666, %v663
    %v991 = vpack.c.b16 %v667, %v664
    %v992 = vpack.c.b16 %v671, %v668
    %v993 = vpack.c.b16 %v672, %v669
    %v994 = vpack.c.b16 %v673, %v670
    %v995 = vpack.c.b16 %v677, %v674
    %v996 = vpack.c.b16 %v678, %v675
    %v997 = vpack.c.b16 %v679, %v676
    %v998 = vpack.c.b16 %v683, %v680
    %v999 = vpack.c.b16 %v684, %v681
    %v1000 = vpack.c.b16 %v685, %v682
    %v1001 = vpack.c.b16 %v689, %v686
    %v1002 = vpack.c.b16 %v690, %v687
    %v1003 = vpack.c.b16 %v691, %v688
    %v1004 = vpack.c.b16 %v695, %v692
    %v1005 = vpack.c.b16 %v696, %v693
    %v1006 = vpack.c.b16 %v697, %v694
    %v1007 = vpack.c.b16 %v701, %v698
    %v1008 = vpack.c.b16 %v702, %v699
    %v1009 = vpack.c.b16 %v703, %v700
    %v1010 = vpack.c.b16 %v707, %v704
    %v1011 = vpack.c.b16 %v708, %v705
    %v1012 = vpack.c.b16 %v709, %v706
    %v1013 = vpack.c.b16 %v713, %v710
    %v1014 = vpack.c.b16 %v714, %v711
    %v1015 = vpack.c.b16 %v715, %v712
    %v1016 = vpack.c.b16 %v719, %v716
    %v1017 = vpack.c.b16 %v720, %v717
    %v1018 = vpack.c.b16 %v721, %v718
    %v1019 = vpack.c.b16 %v725, %v722
    %v1020 = vpack.c.b16 %v726, %v723
    %v1021 = vpack.c.b16 %v727, %v724
    %v1022 = vpack.c.b16 %v731, %v728
    %v1023 = vpack.c.b16 %v732, %v729
    %v1024 = vpack.c.b16 %v733, %v730
    %v1025 = vpack.c.b16 %v737, %v734
    %v1026 = vpack.c.b16 %v738, %v735
    %v1027 = vpack.c.b16 %v739, %v736
    %v1028 = vpack.c.b16 %v743, %v740
    %v1029 = vpack.c.b16 %v744, %v741
    %v1030 = vpack.c.b16 %v745, %v742
    %v1031 = vpack.c.b16 %v749, %v746
    %v1032 = vpack.c.b16 %v750, %v747
    %v1033 = vpack.c.b16 %v751, %v748
    %v1034 = vpack.c.b16 %v755, %v752
    %v1035 = vpack.c.b16 %v756, %v753
    %v1036 = vpack.c.b16 %v757, %v754
    %v1037 = vpack.c.b16 %v761, %v758
    %v1038 = vpack.c.b16 %v762, %v759
    %v1039 = vpack.c.b16 %v763, %v760
    %v1040 = vpack.c.b16 %v767, %v764
    %v1041 = vpack.c.b16 %v768, %v765
    %v1042 = vpack.c.b16 %v769, %v766
    %v1043 = vpack.c.b16 %v773, %v770
    %v1044 = vpack.c.b16 %v774, %v771
    %v1045 = vpack.c.b16 %v775, %v772
    %v1046 = vpack.c.b16 %v779, %v776
    %v1047 = vpack.c.b16 %v780, %v777
    %v1048 = vpack.c.b16 %v781, %v778
    %v1049 = vpack.c.b16 %v785, %v782
    %v1050 = vpack.c.b16 %v786, %v783
    %v1051 = vpack.c.b16 %v787, %v784
    %v1052 = vpack.c.b16 %v791, %v788
    %v1053 = vpack.c.b16 %v792, %v789
    %v1054 = vpack.c.b16 %v793, %v790
    %v1055 = vpack.c.b16 %v797, %v794
    %v1056 = vpack.c.b16 %v798, %v795
    %v1057 = vpack.c.b16 %v799, %v796
    %v1058 = vpack.c.b16 %v803, %v800
    %v1059 = vpack.c.b16 %v804, %v801
    %v1060 = vpack.c.b16 %v805, %v802
    %v1061 = vpack.c.b16 %v809, %v806
    %v1062 = vpack.c.b16 %v810, %v807
    %v1063 = vpack.c.b16 %v811, %v808
    %v1064 = vpack.c.b16 %v815, %v812
    %v1065 = vpack.c.b16 %v816, %v813
    %v1066 = vpack.c.b16 %v817, %v814
    %v1067 = vpack.c.b16 %v821, %v818
    %v1068 = vpack.c.b16 %v822, %v819
    %v1069 = vpack.c.b16 %v823, %v820
    %v1070 = vpack.c.b16 %v827, %v824
    %v1071 = vpack.c.b16 %v828, %v825
    %v1072 = vpack.c.b16 %v829, %v826
    %v1073 = vpack.c.b16 %v833, %v830
    %v1074 = vpack.c.b16 %v834, %v831
    %v1075 = vpack.c.b16 %v835, %v832
    %v1076 = vpack.c.b16 %v839, %v836
    %v1077 = vpack.c.b16 %v840, %v837
    %v1078 = vpack.c.b16 %v841, %v838
    %v1079 = vpack.c.b16 %v845, %v842
    %v1080 = vpack.c.b16 %v846, %v843
    %v1081 = vpack.c.b16 %v847, %v844
    %v1082 = vpack.c.b16 %v851, %v848
    %v1083 = vpack.c.b16 %v852, %v849
    %v1084 = vpack.c.b16 %v853, %v850
    %v1085 = vpack.c.b16 %v857, %v854
    %v1086 = vpack.c.b16 %v858, %v855
    %v1087 = vpack.c.b16 %v859, %v856
    %v1088 = vpack.c.b16 %v863, %v860
    %v1089 = vpack.c.b16 %v864, %v861
    %v1090 = vpack.c.b16 %v865, %v862
    %v1091 = vpack.c.b16 %v869, %v866
    %v1092 = vpack.c.b16 %v870, %v867
    %v1093 = vpack.c.b16 %v871, %v868
    %v1094 = vpack.c.b16 %v875, %v872
    %v1095 = vpack.c.b16 %v876, %v873
    %v1096 = vpack.c.b16 %v877, %v874
    %v1097 = vpack.c.b16 %v881, %v878
    %v1098 = vpack.c.b16 %v882, %v879
    %v1099 = vpack.c.b16 %v883, %v880
    %v1100 = vpack.c.b16 %v887, %v884
    %v1101 = vpack.c.b16 %v888, %v885
    %v1102 = vpack.c.b16 %v889, %v886
    %v1103 = vpack.c.b16 %v893, %v890
    %v1104 = vpack.c.b16 %v894, %v891
    %v1105 = vpack.c.b16 %v895, %v892
    %v1106 = vpack.c.b16 %v899, %v896
    %v1107 = vpack.c.b16 %v900, %v897
    %v1108 = vpack.c.b16 %v901, %v898
    %v1109 = vpack.c.b16 %v905, %v902
    %v1110 = vpack.c.b16 %v906, %v903
    %v1111 = vpack.c.b16 %v907, %v904
    %v1112 = vpack.c.b16 %v911, %v908
    %v1113 = vpack.c.b16 %v912, %v909
    %v1114 = vpack.c.b16 %v913, %v910
    %v1115 = vpack.c.b16 %v917, %v914
    %v1116 = vpack.c.b16 %v918, %v915
    %v1117 = vpack.c.b16 %v919, %v916
    %v1118 = vpack.c.b16 %v923, %v920
    %v1119 = vpack.c.b16 %v924, %v921
    %v1120 = vpack.c.b16 %v925, %v922
    %v1121 = vpack.c.b16 %v929, %v926
    %v1122 = vpack.c.b16 %v930, %v927
    %v1123 = vpack.c.b16 %v931, %v928
    %v1124 = vpack.c.b16 %v935, %v932
    %v1125 = vpack.c.b16 %v936, %v933
    %v1126 = vpack.c.b16 %v937, %v934
    %v1127 = vpack.c.b16 %v941, %v938
    %v1128 = vpack.c.b16 %v942, %v939
    %v1129 = vpack.c.b16 %v943, %v940
    %vm1313 = vcmask 752640
    %v1315 = vsel %vm1313, %v316, 0
    %vm1317 = vcmask 1045504
    %v1319 = vsel %vm1317, %v1127, 0
    %v1322 = vsel %vm1317, %v1128, 0
    %v1325 = vsel %vm1317, %v1129, 0
    %1327 = vmatprep.subr.bf16.mxu0 %v966
    %1328 = vmatpush1.bf16.msra.mxu0 %v965
    %1329 = vmatprep.subr.bf16.mxu0 %v963
    %1330 = vmatpush1.bf16.msra.mxu0 %v962
    %1331 = vmatprep.subr.bf16.mxu0 %v960
    %1332 = vmatpush1.bf16.msra.mxu0 %v959
    %1333 = vmatprep.subr.bf16.mxu0 %v957
    %1334 = vmatpush1.bf16.msra.mxu0 %v956
    %1335 = vmatprep.subr.bf16.mxu0 %v954
    %1336 = vmatpush1.bf16.msra.mxu0 %v953
    %1337 = vmatprep.subr.bf16.mxu0 %v951
    %1338 = vmatpush1.bf16.msra.mxu0 %v950
    %1339 = vmatprep.subr.bf16.mxu0 %v948
    %1340 = vmatpush1.bf16.msra.mxu0 %v947
    %1341 = vmatprep.subr.bf16.mxu0 %v945
    %1342 = vmatpush1.bf16.msra.mxu0 %v944
    %1343 = vmatprep.subr.bf16.mxu0 %v990
    %1344 = vmatpush2.bf16.msra.mxu0 %v989
    %1345 = vmatprep.subr.bf16.mxu0 %v987
    %1346 = vmatpush2.bf16.msra.mxu0 %v986
    %1347 = vmatprep.subr.bf16.mxu0 %v984
    %1348 = vmatpush2.bf16.msra.mxu0 %v983
    %1349 = vmatprep.subr.bf16.mxu0 %v981
    %1350 = vmatpush2.bf16.msra.mxu0 %v980
    %1351 = vmatprep.subr.bf16.mxu0 %v978
    %1352 = vmatpush2.bf16.msra.mxu0 %v977
    %1353 = vmatprep.subr.bf16.mxu0 %v975
    %1354 = vmatpush2.bf16.msra.mxu0 %v974
    %1355 = vmatprep.subr.bf16.mxu0 %v972
    %1356 = vmatpush2.bf16.msra.mxu0 %v971
    %1357 = vmatprep.subr.bf16.mxu0 %v969
    %1358 = vmatpush2.bf16.msra.mxu0 %v968
    %1359 = vmatprep.mubr.bf16.mxu0 %v310
    %1360 = vmatmul.mubr.bf16.gmra.mxu0 %v309
    %v1361 = vpop.f32.mrf.mxu0
    %v1362 = vadd.f32 %v285, %v1361
    %v1363 = vpop.f32.mrf.mxu0
    %v1364 = vadd.f32 %v289, %v1363
    %v1365 = vpop.f32.mrf.mxu0
    %v1366 = vpop.f32.mrf.mxu0
    %1367 = vdwg.mxu0
    %1368 = vmatprep.subr.bf16.mxu0 %v1014
    %1369 = vmatpush1.bf16.msra.mxu0 %v1013
    %1370 = vmatprep.subr.bf16.mxu0 %v1011
    %1371 = vmatpush1.bf16.msra.mxu0 %v1010
    %1372 = vmatprep.subr.bf16.mxu0 %v1008
    %1373 = vmatpush1.bf16.msra.mxu0 %v1007
    %1374 = vmatprep.subr.bf16.mxu0 %v1005
    %1375 = vmatpush1.bf16.msra.mxu0 %v1004
    %1376 = vmatprep.subr.bf16.mxu0 %v1002
    %1377 = vmatpush1.bf16.msra.mxu0 %v1001
    %1378 = vmatprep.subr.bf16.mxu0 %v999
    %1379 = vmatpush1.bf16.msra.mxu0 %v998
    %1380 = vmatprep.subr.bf16.mxu0 %v996
    %1381 = vmatpush1.bf16.msra.mxu0 %v995
    %1382 = vmatprep.subr.bf16.mxu0 %v993
    %1383 = vmatpush1.bf16.msra.mxu0 %v992
    %1384 = vmatprep.subr.bf16.mxu0 %v1038
    %1385 = vmatpush2.bf16.msra.mxu0 %v1037
    %1386 = vmatprep.subr.bf16.mxu0 %v1035
    %1387 = vmatpush2.bf16.msra.mxu0 %v1034
    %1388 = vmatprep.subr.bf16.mxu0 %v1032
    %1389 = vmatpush2.bf16.msra.mxu0 %v1031
    %1390 = vmatprep.subr.bf16.mxu0 %v1029
    %1391 = vmatpush2.bf16.msra.mxu0 %v1028
    %1392 = vmatprep.subr.bf16.mxu0 %v1026
    %1393 = vmatpush2.bf16.msra.mxu0 %v1025
    %1394 = vmatprep.subr.bf16.mxu0 %v1023
    %1395 = vmatpush2.bf16.msra.mxu0 %v1022
    %1396 = vmatprep.subr.bf16.mxu0 %v1020
    %1397 = vmatpush2.bf16.msra.mxu0 %v1019
    %1398 = vmatprep.subr.bf16.mxu0 %v1017
    %1399 = vmatpush2.bf16.msra.mxu0 %v1016
    %1400 = vmatprep.mubr.bf16.mxu0 %v312
    %1401 = vmatmul.mubr.bf16.gmra.mxu0 %v311
    %v1402 = vpop.f32.mrf.mxu0
    %v1403 = vadd.f32 %v1362, %v1402
    %v1404 = vpop.f32.mrf.mxu0
    %v1405 = vadd.f32 %v1364, %v1404
    %v1406 = vpop.f32.mrf.mxu0
    %v1407 = vpop.f32.mrf.mxu0
    %1408 = vdwg.mxu0
    %1409 = vmatprep.subr.bf16.mxu0 %v1062
    %1410 = vmatpush1.bf16.msra.mxu0 %v1061
    %1411 = vmatprep.subr.bf16.mxu0 %v1059
    %1412 = vmatpush1.bf16.msra.mxu0 %v1058
    %1413 = vmatprep.subr.bf16.mxu0 %v1056
    %1414 = vmatpush1.bf16.msra.mxu0 %v1055
    %1415 = vmatprep.subr.bf16.mxu0 %v1053
    %1416 = vmatpush1.bf16.msra.mxu0 %v1052
    %1417 = vmatprep.subr.bf16.mxu0 %v1050
    %1418 = vmatpush1.bf16.msra.mxu0 %v1049
    %1419 = vmatprep.subr.bf16.mxu0 %v1047
    %1420 = vmatpush1.bf16.msra.mxu0 %v1046
    %1421 = vmatprep.subr.bf16.mxu0 %v1044
    %1422 = vmatpush1.bf16.msra.mxu0 %v1043
    %1423 = vmatprep.subr.bf16.mxu0 %v1041
    %1424 = vmatpush1.bf16.msra.mxu0 %v1040
    %1425 = vmatprep.subr.bf16.mxu0 %v1086
    %1426 = vmatpush2.bf16.msra.mxu0 %v1085
    %1427 = vmatprep.subr.bf16.mxu0 %v1083
    %1428 = vmatpush2.bf16.msra.mxu0 %v1082
    %1429 = vmatprep.subr.bf16.mxu0 %v1080
    %1430 = vmatpush2.bf16.msra.mxu0 %v1079
    %1431 = vmatprep.subr.bf16.mxu0 %v1077
    %1432 = vmatpush2.bf16.msra.mxu0 %v1076
    %1433 = vmatprep.subr.bf16.mxu0 %v1074
    %1434 = vmatpush2.bf16.msra.mxu0 %v1073
    %1435 = vmatprep.subr.bf16.mxu0 %v1071
    %1436 = vmatpush2.bf16.msra.mxu0 %v1070
    %1437 = vmatprep.subr.bf16.mxu0 %v1068
    %1438 = vmatpush2.bf16.msra.mxu0 %v1067
    %1439 = vmatprep.subr.bf16.mxu0 %v1065
    %1440 = vmatpush2.bf16.msra.mxu0 %v1064
    %1441 = vmatprep.mubr.bf16.mxu0 %v314
    %1442 = vmatmul.mubr.bf16.gmra.mxu0 %v313
    %v1443 = vpop.f32.mrf.mxu0
    %v1444 = vadd.f32 %v1403, %v1443
    %v1445 = vpop.f32.mrf.mxu0
    %v1446 = vadd.f32 %v1405, %v1445
    %v1447 = vpop.f32.mrf.mxu0
    %v1448 = vpop.f32.mrf.mxu0
    %1449 = vdwg.mxu0
    %1450 = vmatprep.subr.bf16.mxu0 %v1110
    %1451 = vmatpush1.bf16.msra.mxu0 %v1109
    %1452 = vmatprep.subr.bf16.mxu0 %v1107
    %1453 = vmatpush1.bf16.msra.mxu0 %v1106
    %1454 = vmatprep.subr.bf16.mxu0 %v1104
    %1455 = vmatpush1.bf16.msra.mxu0 %v1103
    %1456 = vmatprep.subr.bf16.mxu0 %v1101
    %1457 = vmatpush1.bf16.msra.mxu0 %v1100
    %1458 = vmatprep.subr.bf16.mxu0 %v1098
    %1459 = vmatpush1.bf16.msra.mxu0 %v1097
    %1460 = vmatprep.subr.bf16.mxu0 %v1095
    %1461 = vmatpush1.bf16.msra.mxu0 %v1094
    %1462 = vmatprep.subr.bf16.mxu0 %v1092
    %1463 = vmatpush1.bf16.msra.mxu0 %v1091
    %1464 = vmatprep.subr.bf16.mxu0 %v1089
    %1465 = vmatpush1.bf16.msra.mxu0 %v1088
    %1466 = vmatprep.subr.bf16.mxu0 0
    %1467 = vmatpush2.bf16.msra.mxu0 0
    %1468 = vmatprep.subr.bf16.mxu0 0
    %1469 = vmatpush2.bf16.msra.mxu0 0
    %1470 = vmatprep.subr.bf16.mxu0 %v1322
    %1471 = vmatpush2.bf16.msra.mxu0 %v1319
    %1472 = vmatprep.subr.bf16.mxu0 %v1125
    %1473 = vmatpush2.bf16.msra.mxu0 %v1124
    %1474 = vmatprep.subr.bf16.mxu0 %v1122
    %1475 = vmatpush2.bf16.msra.mxu0 %v1121
    %1476 = vmatprep.subr.bf16.mxu0 %v1119
    %1477 = vmatpush2.bf16.msra.mxu0 %v1118
    %1478 = vmatprep.subr.bf16.mxu0 %v1116
    %1479 = vmatpush2.bf16.msra.mxu0 %v1115
    %1480 = vmatprep.subr.bf16.mxu0 %v1113
    %1481 = vmatpush2.bf16.msra.mxu0 %v1112
    %1482 = vmatprep.mubr.bf16.mxu0 %v1315
    %1483 = vmatmul.mubr.bf16.gmra.mxu0 %v315
    %v1484 = vpop.f32.mrf.mxu0
    %v1485 = vadd.f32 %v1444, %v1484
    %v1486 = vpop.f32.mrf.mxu0
    %v1487 = vadd.f32 %v1446, %v1486
    %v1488 = vpop.f32.mrf.mxu0
    %v1489 = vpop.f32.mrf.mxu0
    %1490 = vdwg.mxu0
    %1491 = vmatprep.subr.bf16.mxu0 0
    %1492 = vmatpush1.bf16.msra.mxu0 %v967
    %1493 = vmatprep.subr.bf16.mxu0 0
    %1494 = vmatpush1.bf16.msra.mxu0 %v964
    %1495 = vmatprep.subr.bf16.mxu0 0
    %1496 = vmatpush1.bf16.msra.mxu0 %v961
    %1497 = vmatprep.subr.bf16.mxu0 0
    %1498 = vmatpush1.bf16.msra.mxu0 %v958
    %1499 = vmatprep.subr.bf16.mxu0 0
    %1500 = vmatpush1.bf16.msra.mxu0 %v955
    %1501 = vmatprep.subr.bf16.mxu0 0
    %1502 = vmatpush1.bf16.msra.mxu0 %v952
    %1503 = vmatprep.subr.bf16.mxu0 0
    %1504 = vmatpush1.bf16.msra.mxu0 %v949
    %1505 = vmatprep.subr.bf16.mxu0 0
    %1506 = vmatpush1.bf16.msra.mxu0 %v946
    %1507 = vmatprep.subr.bf16.mxu0 0
    %1508 = vmatpush2.bf16.msra.mxu0 %v991
    %1509 = vmatprep.subr.bf16.mxu0 0
    %1510 = vmatpush2.bf16.msra.mxu0 %v988
    %1511 = vmatprep.subr.bf16.mxu0 0
    %1512 = vmatpush2.bf16.msra.mxu0 %v985
    %1513 = vmatprep.subr.bf16.mxu0 0
    %1514 = vmatpush2.bf16.msra.mxu0 %v982
    %1515 = vmatprep.subr.bf16.mxu0 0
    %1516 = vmatpush2.bf16.msra.mxu0 %v979
    %1517 = vmatprep.subr.bf16.mxu0 0
    %1518 = vmatpush2.bf16.msra.mxu0 %v976
    %1519 = vmatprep.subr.bf16.mxu0 0
    %1520 = vmatpush2.bf16.msra.mxu0 %v973
    %1521 = vmatprep.subr.bf16.mxu0 0
    %1522 = vmatpush2.bf16.msra.mxu0 %v970
    %1523 = vmatprep.mubr.bf16.mxu0 %v310
    %1524 = vmatmul.mubr.bf16.gmra.mxu0 %v309
    %v1525 = vpop.f32.mrf.mxu0
    %v1526 = vadd.f32 %v293, %v1525
    %v1527 = vpop.f32.mrf.mxu0
    %v1528 = vpop.f32.mrf.mxu0
    %v1529 = vpop.f32.mrf.mxu0
    %1530 = vdwg.mxu0
    %1531 = vmatprep.subr.bf16.mxu0 0
    %1532 = vmatpush1.bf16.msra.mxu0 %v1015
    %1533 = vmatprep.subr.bf16.mxu0 0
    %1534 = vmatpush1.bf16.msra.mxu0 %v1012
    %1535 = vmatprep.subr.bf16.mxu0 0
    %1536 = vmatpush1.bf16.msra.mxu0 %v1009
    %1537 = vmatprep.subr.bf16.mxu0 0
    %1538 = vmatpush1.bf16.msra.mxu0 %v1006
    %1539 = vmatprep.subr.bf16.mxu0 0
    %1540 = vmatpush1.bf16.msra.mxu0 %v1003
    %1541 = vmatprep.subr.bf16.mxu0 0
    %1542 = vmatpush1.bf16.msra.mxu0 %v1000
    %1543 = vmatprep.subr.bf16.mxu0 0
    %1544 = vmatpush1.bf16.msra.mxu0 %v997
    %1545 = vmatprep.subr.bf16.mxu0 0
    %1546 = vmatpush1.bf16.msra.mxu0 %v994
    %1547 = vmatprep.subr.bf16.mxu0 0
    %1548 = vmatpush2.bf16.msra.mxu0 %v1039
    %1549 = vmatprep.subr.bf16.mxu0 0
    %1550 = vmatpush2.bf16.msra.mxu0 %v1036
    %1551 = vmatprep.subr.bf16.mxu0 0
    %1552 = vmatpush2.bf16.msra.mxu0 %v1033
    %1553 = vmatprep.subr.bf16.mxu0 0
    %1554 = vmatpush2.bf16.msra.mxu0 %v1030
    %1555 = vmatprep.subr.bf16.mxu0 0
    %1556 = vmatpush2.bf16.msra.mxu0 %v1027
    %1557 = vmatprep.subr.bf16.mxu0 0
    %1558 = vmatpush2.bf16.msra.mxu0 %v1024
    %1559 = vmatprep.subr.bf16.mxu0 0
    %1560 = vmatpush2.bf16.msra.mxu0 %v1021
    %1561 = vmatprep.subr.bf16.mxu0 0
    %1562 = vmatpush2.bf16.msra.mxu0 %v1018
    %1563 = vmatprep.mubr.bf16.mxu0 %v312
    %1564 = vmatmul.mubr.bf16.gmra.mxu0 %v311
    %v1565 = vpop.f32.mrf.mxu0
    %v1566 = vadd.f32 %v1526, %v1565
    %v1567 = vpop.f32.mrf.mxu0
    %v1568 = vpop.f32.mrf.mxu0
    %v1569 = vpop.f32.mrf.mxu0
    %1570 = vdwg.mxu0
    %1571 = vmatprep.subr.bf16.mxu0 0
    %1572 = vmatpush1.bf16.msra.mxu0 %v1063
    %1573 = vmatprep.subr.bf16.mxu0 0
    %1574 = vmatpush1.bf16.msra.mxu0 %v1060
    %1575 = vmatprep.subr.bf16.mxu0 0
    %1576 = vmatpush1.bf16.msra.mxu0 %v1057
    %1577 = vmatprep.subr.bf16.mxu0 0
    %1578 = vmatpush1.bf16.msra.mxu0 %v1054
    %1579 = vmatprep.subr.bf16.mxu0 0
    %1580 = vmatpush1.bf16.msra.mxu0 %v1051
    %1581 = vmatprep.subr.bf16.mxu0 0
    %1582 = vmatpush1.bf16.msra.mxu0 %v1048
    %1583 = vmatprep.subr.bf16.mxu0 0
    %1584 = vmatpush1.bf16.msra.mxu0 %v1045
    %1585 = vmatprep.subr.bf16.mxu0 0
    %1586 = vmatpush1.bf16.msra.mxu0 %v1042
    %1587 = vmatprep.subr.bf16.mxu0 0
    %1588 = vmatpush2.bf16.msra.mxu0 %v1087
    %1589 = vmatprep.subr.bf16.mxu0 0
    %1590 = vmatpush2.bf16.msra.mxu0 %v1084
    %1591 = vmatprep.subr.bf16.mxu0 0
    %1592 = vmatpush2.bf16.msra.mxu0 %v1081
    %1593 = vmatprep.subr.bf16.mxu0 0
    %1594 = vmatpush2.bf16.msra.mxu0 %v1078
    %1595 = vmatprep.subr.bf16.mxu0 0
    %1596 = vmatpush2.bf16.msra.mxu0 %v1075
    %1597 = vmatprep.subr.bf16.mxu0 0
    %1598 = vmatpush2.bf16.msra.mxu0 %v1072
    %1599 = vmatprep.subr.bf16.mxu0 0
    %1600 = vmatpush2.bf16.msra.mxu0 %v1069
    %1601 = vmatprep.subr.bf16.mxu0 0
    %1602 = vmatpush2.bf16.msra.mxu0 %v1066
    %1603 = vmatprep.mubr.bf16.mxu0 %v314
    %1604 = vmatmul.mubr.bf16.gmra.mxu0 %v313
    %v1605 = vpop.f32.mrf.mxu0
    %v1606 = vadd.f32 %v1566, %v1605
    %v1607 = vpop.f32.mrf.mxu0
    %v1608 = vpop.f32.mrf.mxu0
    %v1609 = vpop.f32.mrf.mxu0
    %1610 = vdwg.mxu0
    %1611 = vmatprep.subr.bf16.mxu0 0
    %1612 = vmatpush1.bf16.msra.mxu0 %v1111
    %1613 = vmatprep.subr.bf16.mxu0 0
    %1614 = vmatpush1.bf16.msra.mxu0 %v1108
    %1615 = vmatprep.subr.bf16.mxu0 0
    %1616 = vmatpush1.bf16.msra.mxu0 %v1105
    %1617 = vmatprep.subr.bf16.mxu0 0
    %1618 = vmatpush1.bf16.msra.mxu0 %v1102
    %1619 = vmatprep.subr.bf16.mxu0 0
    %1620 = vmatpush1.bf16.msra.mxu0 %v1099
    %1621 = vmatprep.subr.bf16.mxu0 0
    %1622 = vmatpush1.bf16.msra.mxu0 %v1096
    %1623 = vmatprep.subr.bf16.mxu0 0
    %1624 = vmatpush1.bf16.msra.mxu0 %v1093
    %1625 = vmatprep.subr.bf16.mxu0 0
    %1626 = vmatpush1.bf16.msra.mxu0 %v1090
    %1627 = vmatprep.subr.bf16.mxu0 0
    %1628 = vmatpush2.bf16.msra.mxu0 0
    %1629 = vmatprep.subr.bf16.mxu0 0
    %1630 = vmatpush2.bf16.msra.mxu0 0
    %1631 = vmatprep.subr.bf16.mxu0 0
    %1632 = vmatpush2.bf16.msra.mxu0 %v1325
    %1633 = vmatprep.subr.bf16.mxu0 0
    %1634 = vmatpush2.bf16.msra.mxu0 %v1126
    %1635 = vmatprep.subr.bf16.mxu0 0
    %1636 = vmatpush2.bf16.msra.mxu0 %v1123
    %1637 = vmatprep.subr.bf16.mxu0 0
    %1638 = vmatpush2.bf16.msra.mxu0 %v1120
    %1639 = vmatprep.subr.bf16.mxu0 0
    %1640 = vmatpush2.bf16.msra.mxu0 %v1117
    %1641 = vmatprep.subr.bf16.mxu0 0
    %1642 = vmatpush2.bf16.msra.mxu0 %v1114
    %1643 = vmatprep.mubr.bf16.mxu0 %v1315
    %1644 = vmatmul.mubr.bf16.gmra.mxu0 %v315
    %v1645 = vpop.f32.mrf.mxu0
    %v1646 = vadd.f32 %v1606, %v1645
    %v1647 = vpop.f32.mrf.mxu0
    %v1648 = vpop.f32.mrf.mxu0
    %v1649 = vpop.f32.mrf.mxu0
    %1650 = vdwg.mxu0
    %v1651 = vmax.f32 %v1485, 0.0
    %v1652 = vmax.f32 %v1487, 0.0
    %v1653 = vmax.f32 %v1646, 0.0
    %v1654 = vpack.c.bf16 %v1651, %v1651
    %v1655 = vpack.c.bf16 %v1652, %v1652
    %v1656 = vpack.c.bf16 %v1653, %v1653
    %v1657 = vld [vmem:[%s3] sm:$0xff]
    %v1658 = vld [vmem:[%s3 + $0x8] sm:$0xff]
    %v1659 = vld [vmem:[%s3 + $0x10] sm:$0xf]
    %v1660 = vld [vmem:[%s3 + $0x14] sm:$0xff]
    %v1661 = vld [vmem:[%s3 + $0x1c] sm:$0xff]
    %v1662 = vld [vmem:[%s3 + $0x24] sm:$0xf]
    %v1663 = vld [vmem:[%s3 + $0x28] sm:$0xff]
    %v1664 = vld [vmem:[%s3 + $0x30] sm:$0xff]
    %v1665 = vld [vmem:[%s3 + $0x38] sm:$0xf]
    %v1666 = vld [vmem:[%s3 + $0x3c] sm:$0xff]
    %v1667 = vld [vmem:[%s3 + $0x44] sm:$0xff]
    %v1668 = vld [vmem:[%s3 + $0x4c] sm:$0xf]
    %v1669 = vld [vmem:[%s3 + $0x50] sm:$0xff]
    %v1670 = vld [vmem:[%s3 + $0x58] sm:$0xff]
    %v1671 = vld [vmem:[%s3 + $0x60] sm:$0xf]
    %v1672 = vld [vmem:[%s3 + $0x64] sm:$0xff]
    %v1673 = vld [vmem:[%s3 + $0x6c] sm:$0xff]
    %v1674 = vld [vmem:[%s3 + $0x74] sm:$0xf]
    %v1675 = vld [vmem:[%s3 + $0x78] sm:$0xff]
    %v1676 = vld [vmem:[%s3 + $0x80] sm:$0xff]
    %v1677 = vld [vmem:[%s3 + $0x88] sm:$0xf]
    %v1678 = vld [vmem:[%s3 + $0x8c] sm:$0xff]
    %v1679 = vld [vmem:[%s3 + $0x94] sm:$0xff]
    %v1680 = vld [vmem:[%s3 + $0x9c] sm:$0xf]
    %v1681 = vld [vmem:[%s3 + $0xa0] sm:$0xff]
    %v1682 = vld [vmem:[%s3 + $0xa8] sm:$0xff]
    %v1683 = vld [vmem:[%s3 + $0xb0] sm:$0xf]
    %v1684 = vld [vmem:[%s3 + $0xb4] sm:$0xff]
    %v1685 = vld [vmem:[%s3 + $0xbc] sm:$0xff]
    %v1686 = vld [vmem:[%s3 + $0xc4] sm:$0xf]
    %v1687 = vld [vmem:[%s3 + $0xc8] sm:$0xff]
    %v1688 = vld [vmem:[%s3 + $0xd0] sm:$0xff]
    %v1689 = vld [vmem:[%s3 + $0xd8] sm:$0xf]
    %v1690 = vld [vmem:[%s3 + $0xdc] sm:$0xff]
    %v1691 = vld [vmem:[%s3 + $0xe4] sm:$0xff]
    %v1692 = vld [vmem:[%s3 + $0xec] sm:$0xf]
    %v1693 = vld [vmem:[%s3 + $0xf0] sm:$0xff]
    %v1694 = vld [vmem:[%s3 + $0xf8] sm:$0xff]
    %v1695 = vld [vmem:[%s3 + $0x100] sm:$0xf]
    %v1696 = vld [vmem:[%s3 + $0x104] sm:$0xff]
    %v1697 = vld [vmem:[%s3 + $0x10c] sm:$0xff]
    %v1698 = vld [vmem:[%s3 + $0x114] sm:$0xf]
    %v1699 = vld [vmem:[%s3 + $0x118] sm:$0xff]
    %v1700 = vld [vmem:[%s3 + $0x120] sm:$0xff]
    %v1701 = vld [vmem:[%s3 + $0x128] sm:$0xf]
    %v1702 = vld [vmem:[%s3 + $0x12c] sm:$0xff]
    %v1703 = vld [vmem:[%s3 + $0x134] sm:$0xff]
    %v1704 = vld [vmem:[%s3 + $0x13c] sm:$0xf]
    %v1705 = vld [vmem:[%s3 + $0x140] sm:$0xff]
    %v1706 = vld [vmem:[%s3 + $0x148] sm:$0xff]
    %v1707 = vld [vmem:[%s3 + $0x150] sm:$0xf]
    %v1708 = vld [vmem:[%s3 + $0x154] sm:$0xff]
    %v1709 = vld [vmem:[%s3 + $0x15c] sm:$0xff]
    %v1710 = vld [vmem:[%s3 + $0x164] sm:$0xf]
    %v1711 = vld [vmem:[%s3 + $0x168] sm:$0xff]
    %v1712 = vld [vmem:[%s3 + $0x170] sm:$0xff]
    %v1713 = vld [vmem:[%s3 + $0x178] sm:$0xf]
    %v1714 = vld [vmem:[%s3 + $0x17c] sm:$0xff]
    %v1715 = vld [vmem:[%s3 + $0x184] sm:$0xff]
    %v1716 = vld [vmem:[%s3 + $0x18c] sm:$0xf]
    %v1717 = vld [vmem:[%s3 + $0x190] sm:$0xff]
    %v1718 = vld [vmem:[%s3 + $0x198] sm:$0xff]
    %v1719 = vld [vmem:[%s3 + $0x1a0] sm:$0xf]
    %v1720 = vld [vmem:[%s3 + $0x1a4] sm:$0xff]
    %v1721 = vld [vmem:[%s3 + $0x1ac] sm:$0xff]
    %v1722 = vld [vmem:[%s3 + $0x1b4] sm:$0xf]
    %v1723 = vld [vmem:[%s3 + $0x1b8] sm:$0xff]
    %v1724 = vld [vmem:[%s3 + $0x1c0] sm:$0xff]
    %v1725 = vld [vmem:[%s3 + $0x1c8] sm:$0xf]
    %v1726 = vld [vmem:[%s3 + $0x1cc] sm:$0xff]
    %v1727 = vld [vmem:[%s3 + $0x1d4] sm:$0xff]
    %v1728 = vld [vmem:[%s3 + $0x1dc] sm:$0xf]
    %v1729 = vld [vmem:[%s3 + $0x1e0] sm:$0xff]
    %v1730 = vld [vmem:[%s3 + $0x1e8] sm:$0xff]
    %v1731 = vld [vmem:[%s3 + $0x1f0] sm:$0xf]
    %v1732 = vld [vmem:[%s3 + $0x1f4] sm:$0xff]
    %v1733 = vld [vmem:[%s3 + $0x1fc] sm:$0xff]
    %v1734 = vld [vmem:[%s3 + $0x204] sm:$0xf]
    %v1735 = vld [vmem:[%s3 + $0x208] sm:$0xff]
    %v1736 = vld [vmem:[%s3 + $0x210] sm:$0xff]
    %v1737 = vld [vmem:[%s3 + $0x218] sm:$0xf]
    %v1738 = vld [vmem:[%s3 + $0x21c] sm:$0xff]
    %v1739 = vld [vmem:[%s3 + $0x224] sm:$0xff]
    %v1740 = vld [vmem:[%s3 + $0x22c] sm:$0xf]
    %v1741 = vld [vmem:[%s3 + $0x230] sm:$0xff]
    %v1742 = vld [vmem:[%s3 + $0x238] sm:$0xff]
    %v1743 = vld [vmem:[%s3 + $0x240] sm:$0xf]
    %v1744 = vld [vmem:[%s3 + $0x244] sm:$0xff]
    %v1745 = vld [vmem:[%s3 + $0x24c] sm:$0xff]
    %v1746 = vld [vmem:[%s3 + $0x254] sm:$0xf]
    %v1747 = vld [vmem:[%s3 + $0x258] sm:$0xff]
    %v1748 = vld [vmem:[%s3 + $0x260] sm:$0xff]
    %v1749 = vld [vmem:[%s3 + $0x268] sm:$0xf]
    %v1750 = vld [vmem:[%s3 + $0x26c] sm:$0xff]
    %v1751 = vld [vmem:[%s3 + $0x274] sm:$0xff]
    %v1752 = vld [vmem:[%s3 + $0x27c] sm:$0xf]
    %v1753 = vld [vmem:[%s3 + $0x280] sm:$0xff]
    %v1754 = vld [vmem:[%s3 + $0x288] sm:$0xff]
    %v1755 = vld [vmem:[%s3 + $0x290] sm:$0xf]
    %v1756 = vld [vmem:[%s3 + $0x294] sm:$0xff]
    %v1757 = vld [vmem:[%s3 + $0x29c] sm:$0xff]
    %v1758 = vld [vmem:[%s3 + $0x2a4] sm:$0xf]
    %v1759 = vld [vmem:[%s3 + $0x2a8] sm:$0xff]
    %v1760 = vld [vmem:[%s3 + $0x2b0] sm:$0xff]
    %v1761 = vld [vmem:[%s3 + $0x2b8] sm:$0xf]
    %v1762 = vld [vmem:[%s3 + $0x2bc] sm:$0xff]
    %v1763 = vld [vmem:[%s3 + $0x2c4] sm:$0xff]
    %v1764 = vld [vmem:[%s3 + $0x2cc] sm:$0xf]
    %v1765 = vld [vmem:[%s3 + $0x2d0] sm:$0xff]
    %v1766 = vld [vmem:[%s3 + $0x2d8] sm:$0xff]
    %v1767 = vld [vmem:[%s3 + $0x2e0] sm:$0xf]
    %v1768 = vld [vmem:[%s3 + $0x2e4] sm:$0xff]
    %v1769 = vld [vmem:[%s3 + $0x2ec] sm:$0xff]
    %v1770 = vld [vmem:[%s3 + $0x2f4] sm:$0xf]
    %v1771 = vld [vmem:[%s4] sm:$0x1f]
    %v1773 = vlaneseq
    %v1774 = vshrl.u32 %v1773, 7
    %v1775 = vsub.s32 0, %v1774
    %v1776 = vrot.slane %v1771, %v1775
    %v1777 = vlaneseq
    %v1778 = vshrl.u32 %v1777, 7
    %v1779 = vsub.s32 1, %v1778
    %v1780 = vrot.slane %v1771, %v1779
    %v1781 = vlaneseq
    %v1782 = vshrl.u32 %v1781, 7
    %v1783 = vsub.s32 2, %v1782
    %v1784 = vrot.slane %v1771, %v1783
    %v1785 = vlaneseq
    %v1786 = vshrl.u32 %v1785, 7
    %v1787 = vsub.s32 3, %v1786
    %v1788 = vrot.slane %v1771, %v1787
    %v1789 = vlaneseq
    %v1790 = vshrl.u32 %v1789, 7
    %v1791 = vsub.s32 4, %v1790
    %v1792 = vrot.slane %v1771, %v1791
    %v1912 = vunpack.c.l.b16 %v1657
    %v1913 = vunpack.c.h.b16 %v1657
    %v1914 = vunpack.c.l.b16 %v1658
    %v1915 = vunpack.c.h.b16 %v1658
    %v1916 = vunpack.c.l.b16 %v1659
    %v1917 = vunpack.c.l.b16 %v1660
    %v1918 = vunpack.c.h.b16 %v1660
    %v1919 = vunpack.c.l.b16 %v1661
    %v1920 = vunpack.c.h.b16 %v1661
    %v1921 = vunpack.c.l.b16 %v1662
    %v1922 = vunpack.c.l.b16 %v1663
    %v1923 = vunpack.c.h.b16 %v1663
    %v1924 = vunpack.c.l.b16 %v1664
    %v1925 = vunpack.c.h.b16 %v1664
    %v1926 = vunpack.c.l.b16 %v1665
    %v1927 = vunpack.c.l.b16 %v1666
    %v1928 = vunpack.c.h.b16 %v1666
    %v1929 = vunpack.c.l.b16 %v1667
    %v1930 = vunpack.c.h.b16 %v1667
    %v1931 = vunpack.c.l.b16 %v1668
    %v1932 = vunpack.c.l.b16 %v1669
    %v1933 = vunpack.c.h.b16 %v1669
    %v1934 = vunpack.c.l.b16 %v1670
    %v1935 = vunpack.c.h.b16 %v1670
    %v1936 = vunpack.c.l.b16 %v1671
    %v1937 = vunpack.c.l.b16 %v1672
    %v1938 = vunpack.c.h.b16 %v1672
    %v1939 = vunpack.c.l.b16 %v1673
    %v1940 = vunpack.c.h.b16 %v1673
    %v1941 = vunpack.c.l.b16 %v1674
    %v1942 = vunpack.c.l.b16 %v1675
    %v1943 = vunpack.c.h.b16 %v1675
    %v1944 = vunpack.c.l.b16 %v1676
    %v1945 = vunpack.c.h.b16 %v1676
    %v1946 = vunpack.c.l.b16 %v1677
    %v1947 = vunpack.c.l.b16 %v1678
    %v1948 = vunpack.c.h.b16 %v1678
    %v1949 = vunpack.c.l.b16 %v1679
    %v1950 = vunpack.c.h.b16 %v1679
    %v1951 = vunpack.c.l.b16 %v1680
    %v1952 = vunpack.c.l.b16 %v1681
    %v1953 = vunpack.c.h.b16 %v1681
    %v1954 = vunpack.c.l.b16 %v1682
    %v1955 = vunpack.c.h.b16 %v1682
    %v1956 = vunpack.c.l.b16 %v1683
    %v1957 = vunpack.c.l.b16 %v1684
    %v1958 = vunpack.c.h.b16 %v1684
    %v1959 = vunpack.c.l.b16 %v1685
    %v1960 = vunpack.c.h.b16 %v1685
    %v1961 = vunpack.c.l.b16 %v1686
    %v1962 = vunpack.c.l.b16 %v1687
    %v1963 = vunpack.c.h.b16 %v1687
    %v1964 = vunpack.c.l.b16 %v1688
    %v1965 = vunpack.c.h.b16 %v1688
    %v1966 = vunpack.c.l.b16 %v1689
    %v1967 = vunpack.c.l.b16 %v1690
    %v1968 = vunpack.c.h.b16 %v1690
    %v1969 = vunpack.c.l.b16 %v1691
    %v1970 = vunpack.c.h.b16 %v1691
    %v1971 = vunpack.c.l.b16 %v1692
    %v1972 = vunpack.c.l.b16 %v1693
    %v1973 = vunpack.c.h.b16 %v1693
    %v1974 = vunpack.c.l.b16 %v1694
    %v1975 = vunpack.c.h.b16 %v1694
    %v1976 = vunpack.c.l.b16 %v1695
    %v1977 = vunpack.c.l.b16 %v1696
    %v1978 = vunpack.c.h.b16 %v1696
    %v1979 = vunpack.c.l.b16 %v1697
    %v1980 = vunpack.c.h.b16 %v1697
    %v1981 = vunpack.c.l.b16 %v1698
    %v1982 = vunpack.c.l.b16 %v1699
    %v1983 = vunpack.c.h.b16 %v1699
    %v1984 = vunpack.c.l.b16 %v1700
    %v1985 = vunpack.c.h.b16 %v1700
    %v1986 = vunpack.c.l.b16 %v1701
    %v1987 = vunpack.c.l.b16 %v1702
    %v1988 = vunpack.c.h.b16 %v1702
    %v1989 = vunpack.c.l.b16 %v1703
    %v1990 = vunpack.c.h.b16 %v1703
    %v1991 = vunpack.c.l.b16 %v1704
    %v1992 = vunpack.c.l.b16 %v1705
    %v1993 = vunpack.c.h.b16 %v1705
    %v1994 = vunpack.c.l.b16 %v1706
    %v1995 = vunpack.c.h.b16 %v1706
    %v1996 = vunpack.c.l.b16 %v1707
    %v1997 = vunpack.c.l.b16 %v1708
    %v1998 = vunpack.c.h.b16 %v1708
    %v1999 = vunpack.c.l.b16 %v1709
    %v2000 = vunpack.c.h.b16 %v1709
    %v2001 = vunpack.c.l.b16 %v1710
    %v2002 = vunpack.c.l.b16 %v1711
    %v2003 = vunpack.c.h.b16 %v1711
    %v2004 = vunpack.c.l.b16 %v1712
    %v2005 = vunpack.c.h.b16 %v1712
    %v2006 = vunpack.c.l.b16 %v1713
    %v2007 = vunpack.c.l.b16 %v1714
    %v2008 = vunpack.c.h.b16 %v1714
    %v2009 = vunpack.c.l.b16 %v1715
    %v2010 = vunpack.c.h.b16 %v1715
    %v2011 = vunpack.c.l.b16 %v1716
    %v2012 = vunpack.c.l.b16 %v1717
    %v2013 = vunpack.c.h.b16 %v1717
    %v2014 = vunpack.c.l.b16 %v1718
    %v2015 = vunpack.c.h.b16 %v1718
    %v2016 = vunpack.c.l.b16 %v1719
    %v2017 = vunpack.c.l.b16 %v1720
    %v2018 = vunpack.c.h.b16 %v1720
    %v2019 = vunpack.c.l.b16 %v1721
    %v2020 = vunpack.c.h.b16 %v1721
    %v2021 = vunpack.c.l.b16 %v1722
    %v2022 = vunpack.c.l.b16 %v1723
    %v2023 = vunpack.c.h.b16 %v1723
    %v2024 = vunpack.c.l.b16 %v1724
    %v2025 = vunpack.c.h.b16 %v1724
    %v2026 = vunpack.c.l.b16 %v1725
    %v2027 = vunpack.c.l.b16 %v1726
    %v2028 = vunpack.c.h.b16 %v1726
    %v2029 = vunpack.c.l.b16 %v1727
    %v2030 = vunpack.c.h.b16 %v1727
    %v2031 = vunpack.c.l.b16 %v1728
    %v2032 = vunpack.c.l.b16 %v1729
    %v2033 = vunpack.c.h.b16 %v1729
    %v2034 = vunpack.c.l.b16 %v1730
    %v2035 = vunpack.c.h.b16 %v1730
    %v2036 = vunpack.c.l.b16 %v1731
    %v2037 = vunpack.c.l.b16 %v1732
    %v2038 = vunpack.c.h.b16 %v1732
    %v2039 = vunpack.c.l.b16 %v1733
    %v2040 = vunpack.c.h.b16 %v1733
    %v2041 = vunpack.c.l.b16 %v1734
    %v2042 = vunpack.c.l.b16 %v1735
    %v2043 = vunpack.c.h.b16 %v1735
    %v2044 = vunpack.c.l.b16 %v1736
    %v2045 = vunpack.c.h.b16 %v1736
    %v2046 = vunpack.c.l.b16 %v1737
    %v2047 = vunpack.c.l.b16 %v1738
    %v2048 = vunpack.c.h.b16 %v1738
    %v2049 = vunpack.c.l.b16 %v1739
    %v2050 = vunpack.c.h.b16 %v1739
    %v2051 = vunpack.c.l.b16 %v1740
    %v2052 = vunpack.c.l.b16 %v1741
    %v2053 = vunpack.c.h.b16 %v1741
    %v2054 = vunpack.c.l.b16 %v1742
    %v2055 = vunpack.c.h.b16 %v1742
    %v2056 = vunpack.c.l.b16 %v1743
    %v2057 = vunpack.c.l.b16 %v1744
    %v2058 = vunpack.c.h.b16 %v1744
    %v2059 = vunpack.c.l.b16 %v1745
    %v2060 = vunpack.c.h.b16 %v1745
    %v2061 = vunpack.c.l.b16 %v1746
    %v2062 = vunpack.c.l.b16 %v1747
    %v2063 = vunpack.c.h.b16 %v1747
    %v2064 = vunpack.c.l.b16 %v1748
    %v2065 = vunpack.c.h.b16 %v1748
    %v2066 = vunpack.c.l.b16 %v1749
    %v2067 = vunpack.c.l.b16 %v1750
    %v2068 = vunpack.c.h.b16 %v1750
    %v2069 = vunpack.c.l.b16 %v1751
    %v2070 = vunpack.c.h.b16 %v1751
    %v2071 = vunpack.c.l.b16 %v1752
    %v2072 = vunpack.c.l.b16 %v1753
    %v2073 = vunpack.c.h.b16 %v1753
    %v2074 = vunpack.c.l.b16 %v1754
    %v2075 = vunpack.c.h.b16 %v1754
    %v2076 = vunpack.c.l.b16 %v1755
    %v2077 = vunpack.c.l.b16 %v1756
    %v2078 = vunpack.c.h.b16 %v1756
    %v2079 = vunpack.c.l.b16 %v1757
    %v2080 = vunpack.c.h.b16 %v1757
    %v2081 = vunpack.c.l.b16 %v1758
    %v2082 = vunpack.c.l.b16 %v1759
    %v2083 = vunpack.c.h.b16 %v1759
    %v2084 = vunpack.c.l.b16 %v1760
    %v2085 = vunpack.c.h.b16 %v1760
    %v2086 = vunpack.c.l.b16 %v1761
    %v2087 = vunpack.c.l.b16 %v1762
    %v2088 = vunpack.c.h.b16 %v1762
    %v2089 = vunpack.c.l.b16 %v1763
    %v2090 = vunpack.c.h.b16 %v1763
    %v2091 = vunpack.c.l.b16 %v1764
    %v2092 = vunpack.c.l.b16 %v1765
    %v2093 = vunpack.c.h.b16 %v1765
    %v2094 = vunpack.c.l.b16 %v1766
    %v2095 = vunpack.c.h.b16 %v1766
    %v2096 = vunpack.c.l.b16 %v1767
    %v2097 = vunpack.c.l.b16 %v1768
    %v2098 = vunpack.c.h.b16 %v1768
    %v2099 = vunpack.c.l.b16 %v1769
    %v2100 = vunpack.c.h.b16 %v1769
    %v2101 = vunpack.c.l.b16 %v1770
    %v2102 = vpack.c.b16 %v1917, %v1912
    %v2103 = vpack.c.b16 %v1918, %v1913
    %v2104 = vpack.c.b16 %v1919, %v1914
    %v2105 = vpack.c.b16 %v1920, %v1915
    %v2106 = vpack.c.b16 %v1921, %v1916
    %v2107 = vpack.c.b16 %v1927, %v1922
    %v2108 = vpack.c.b16 %v1928, %v1923
    %v2109 = vpack.c.b16 %v1929, %v1924
    %v2110 = vpack.c.b16 %v1930, %v1925
    %v2111 = vpack.c.b16 %v1931, %v1926
    %v2112 = vpack.c.b16 %v1937, %v1932
    %v2113 = vpack.c.b16 %v1938, %v1933
    %v2114 = vpack.c.b16 %v1939, %v1934
    %v2115 = vpack.c.b16 %v1940, %v1935
    %v2116 = vpack.c.b16 %v1941, %v1936
    %v2117 = vpack.c.b16 %v1947, %v1942
    %v2118 = vpack.c.b16 %v1948, %v1943
    %v2119 = vpack.c.b16 %v1949, %v1944
    %v2120 = vpack.c.b16 %v1950, %v1945
    %v2121 = vpack.c.b16 %v1951, %v1946
    %v2122 = vpack.c.b16 %v1957, %v1952
    %v2123 = vpack.c.b16 %v1958, %v1953
    %v2124 = vpack.c.b16 %v1959, %v1954
    %v2125 = vpack.c.b16 %v1960, %v1955
    %v2126 = vpack.c.b16 %v1961, %v1956
    %v2127 = vpack.c.b16 %v1967, %v1962
    %v2128 = vpack.c.b16 %v1968, %v1963
    %v2129 = vpack.c.b16 %v1969, %v1964
    %v2130 = vpack.c.b16 %v1970, %v1965
    %v2131 = vpack.c.b16 %v1971, %v1966
    %v2132 = vpack.c.b16 %v1977, %v1972
    %v2133 = vpack.c.b16 %v1978, %v1973
    %v2134 = vpack.c.b16 %v1979, %v1974
    %v2135 = vpack.c.b16 %v1980, %v1975
    %v2136 = vpack.c.b16 %v1981, %v1976
    %v2137 = vpack.c.b16 %v1987, %v1982
    %v2138 = vpack.c.b16 %v1988, %v1983
    %v2139 = vpack.c.b16 %v1989, %v1984
    %v2140 = vpack.c.b16 %v1990, %v1985
    %v2141 = vpack.c.b16 %v1991, %v1986
    %v2142 = vpack.c.b16 %v1997, %v1992
    %v2143 = vpack.c.b16 %v1998, %v1993
    %v2144 = vpack.c.b16 %v1999, %v1994
    %v2145 = vpack.c.b16 %v2000, %v1995
    %v2146 = vpack.c.b16 %v2001, %v1996
    %v2147 = vpack.c.b16 %v2007, %v2002
    %v2148 = vpack.c.b16 %v2008, %v2003
    %v2149 = vpack.c.b16 %v2009, %v2004
    %v2150 = vpack.c.b16 %v2010, %v2005
    %v2151 = vpack.c.b16 %v2011, %v2006
    %v2152 = vpack.c.b16 %v2017, %v2012
    %v2153 = vpack.c.b16 %v2018, %v2013
    %v2154 = vpack.c.b16 %v2019, %v2014
    %v2155 = vpack.c.b16 %v2020, %v2015
    %v2156 = vpack.c.b16 %v2021, %v2016
    %v2157 = vpack.c.b16 %v2027, %v2022
    %v2158 = vpack.c.b16 %v2028, %v2023
    %v2159 = vpack.c.b16 %v2029, %v2024
    %v2160 = vpack.c.b16 %v2030, %v2025
    %v2161 = vpack.c.b16 %v2031, %v2026
    %v2162 = vpack.c.b16 %v2037, %v2032
    %v2163 = vpack.c.b16 %v2038, %v2033
    %v2164 = vpack.c.b16 %v2039, %v2034
    %v2165 = vpack.c.b16 %v2040, %v2035
    %v2166 = vpack.c.b16 %v2041, %v2036
    %v2167 = vpack.c.b16 %v2047, %v2042
    %v2168 = vpack.c.b16 %v2048, %v2043
    %v2169 = vpack.c.b16 %v2049, %v2044
    %v2170 = vpack.c.b16 %v2050, %v2045
    %v2171 = vpack.c.b16 %v2051, %v2046
    %v2172 = vpack.c.b16 %v2057, %v2052
    %v2173 = vpack.c.b16 %v2058, %v2053
    %v2174 = vpack.c.b16 %v2059, %v2054
    %v2175 = vpack.c.b16 %v2060, %v2055
    %v2176 = vpack.c.b16 %v2061, %v2056
    %v2177 = vpack.c.b16 %v2067, %v2062
    %v2178 = vpack.c.b16 %v2068, %v2063
    %v2179 = vpack.c.b16 %v2069, %v2064
    %v2180 = vpack.c.b16 %v2070, %v2065
    %v2181 = vpack.c.b16 %v2071, %v2066
    %v2182 = vpack.c.b16 %v2077, %v2072
    %v2183 = vpack.c.b16 %v2078, %v2073
    %v2184 = vpack.c.b16 %v2079, %v2074
    %v2185 = vpack.c.b16 %v2080, %v2075
    %v2186 = vpack.c.b16 %v2081, %v2076
    %v2187 = vpack.c.b16 %v2087, %v2082
    %v2188 = vpack.c.b16 %v2088, %v2083
    %v2189 = vpack.c.b16 %v2089, %v2084
    %v2190 = vpack.c.b16 %v2090, %v2085
    %v2191 = vpack.c.b16 %v2091, %v2086
    %v2192 = vpack.c.b16 %v2097, %v2092
    %v2193 = vpack.c.b16 %v2098, %v2093
    %v2194 = vpack.c.b16 %v2099, %v2094
    %v2195 = vpack.c.b16 %v2100, %v2095
    %v2196 = vpack.c.b16 %v2101, %v2096
    %vm2292 = vcmask 392192
    %v2294 = vsel %vm2292, %v1656, 0
    %2296 = vmatprep.subr.bf16.mxu0 %v2138
    %2297 = vmatpush1.bf16.msra.mxu0 %v2137
    %2298 = vmatprep.subr.bf16.mxu0 %v2133
    %2299 = vmatpush1.bf16.msra.mxu0 %v2132
    %2300 = vmatprep.subr.bf16.mxu0 %v2128
    %2301 = vmatpush1.bf16.msra.mxu0 %v2127
    %2302 = vmatprep.subr.bf16.mxu0 %v2123
    %2303 = vmatpush1.bf16.msra.mxu0 %v2122
    %2304 = vmatprep.subr.bf16.mxu0 %v2118
    %2305 = vmatpush1.bf16.msra.mxu0 %v2117
    %2306 = vmatprep.subr.bf16.mxu0 %v2113
    %2307 = vmatpush1.bf16.msra.mxu0 %v2112
    %2308 = vmatprep.subr.bf16.mxu0 %v2108
    %2309 = vmatpush1.bf16.msra.mxu0 %v2107
    %2310 = vmatprep.subr.bf16.mxu0 %v2103
    %2311 = vmatpush1.bf16.msra.mxu0 %v2102
    %2312 = vmatprep.subr.bf16.mxu0 %v2178
    %2313 = vmatpush2.bf16.msra.mxu0 %v2177
    %2314 = vmatprep.subr.bf16.mxu0 %v2173
    %2315 = vmatpush2.bf16.msra.mxu0 %v2172
    %2316 = vmatprep.subr.bf16.mxu0 %v2168
    %2317 = vmatpush2.bf16.msra.mxu0 %v2167
    %2318 = vmatprep.subr.bf16.mxu0 %v2163
    %2319 = vmatpush2.bf16.msra.mxu0 %v2162
    %2320 = vmatprep.subr.bf16.mxu0 %v2158
    %2321 = vmatpush2.bf16.msra.mxu0 %v2157
    %2322 = vmatprep.subr.bf16.mxu0 %v2153
    %2323 = vmatpush2.bf16.msra.mxu0 %v2152
    %2324 = vmatprep.subr.bf16.mxu0 %v2148
    %2325 = vmatpush2.bf16.msra.mxu0 %v2147
    %2326 = vmatprep.subr.bf16.mxu0 %v2143
    %2327 = vmatpush2.bf16.msra.mxu0 %v2142
    %2328 = vmatprep.mubr.bf16.mxu0 %v1655
    %2329 = vmatmul.mubr.bf16.gmra.mxu0 %v1654
    %v2330 = vpop.f32.mrf.mxu0
    %v2331 = vadd.f32 %v1776, %v2330
    %v2332 = vpop.f32.mrf.mxu0
    %v2333 = vadd.f32 %v1780, %v2332
    %v2334 = vpop.f32.mrf.mxu0
    %v2335 = vpop.f32.mrf.mxu0
    %2336 = vdwg.mxu0
    %2337 = vmatprep.subr.bf16.mxu0 0
    %2338 = vmatpush1.bf16.msra.mxu0 0
    %2339 = vmatprep.subr.bf16.mxu0 0
    %2340 = vmatpush1.bf16.msra.mxu0 0
    %2341 = vmatprep.subr.bf16.mxu0 0
    %2342 = vmatpush1.bf16.msra.mxu0 0
    %2343 = vmatprep.subr.bf16.mxu0 0
    %2344 = vmatpush1.bf16.msra.mxu0 0
    %2345 = vmatprep.subr.bf16.mxu0 0
    %2346 = vmatpush1.bf16.msra.mxu0 0
    %2347 = vmatprep.subr.bf16.mxu0 %v2193
    %2348 = vmatpush1.bf16.msra.mxu0 %v2192
    %2349 = vmatprep.subr.bf16.mxu0 %v2188
    %2350 = vmatpush1.bf16.msra.mxu0 %v2187
    %2351 = vmatprep.subr.bf16.mxu0 %v2183
    %2352 = vmatpush1.bf16.msra.mxu0 %v2182
    %2353 = vmatprep.subr.bf16.mxu0 0
    %2354 = vmatpush2.bf16.msra.mxu0 0
    %2355 = vmatprep.subr.bf16.mxu0 0
    %2356 = vmatpush2.bf16.msra.mxu0 0
    %2357 = vmatprep.subr.bf16.mxu0 0
    %2358 = vmatpush2.bf16.msra.mxu0 0
    %2359 = vmatprep.subr.bf16.mxu0 0
    %2360 = vmatpush2.bf16.msra.mxu0 0
    %2361 = vmatprep.subr.bf16.mxu0 0
    %2362 = vmatpush2.bf16.msra.mxu0 0
    %2363 = vmatprep.subr.bf16.mxu0 0
    %2364 = vmatpush2.bf16.msra.mxu0 0
    %2365 = vmatprep.subr.bf16.mxu0 0
    %2366 = vmatpush2.bf16.msra.mxu0 0
    %2367 = vmatprep.subr.bf16.mxu0 0
    %2368 = vmatpush2.bf16.msra.mxu0 0
    %2369 = vmatprep.mubr.bf16.mxu0 0
    %2370 = vmatmul.mubr.bf16.gmra.mxu0 %v2294
    %v2371 = vpop.f32.mrf.mxu0
    %v2372 = vadd.f32 %v2331, %v2371
    %v2373 = vpop.f32.mrf.mxu0
    %v2374 = vadd.f32 %v2333, %v2373
    %v2375 = vpop.f32.mrf.mxu0
    %v2376 = vpop.f32.mrf.mxu0
    %2377 = vdwg.mxu0
    %2378 = vmatprep.subr.bf16.mxu0 %v2140
    %2379 = vmatpush1.bf16.msra.mxu0 %v2139
    %2380 = vmatprep.subr.bf16.mxu0 %v2135
    %2381 = vmatpush1.bf16.msra.mxu0 %v2134
    %2382 = vmatprep.subr.bf16.mxu0 %v2130
    %2383 = vmatpush1.bf16.msra.mxu0 %v2129
    %2384 = vmatprep.subr.bf16.mxu0 %v2125
    %2385 = vmatpush1.bf16.msra.mxu0 %v2124
    %2386 = vmatprep.subr.bf16.mxu0 %v2120
    %2387 = vmatpush1.bf16.msra.mxu0 %v2119
    %2388 = vmatprep.subr.bf16.mxu0 %v2115
    %2389 = vmatpush1.bf16.msra.mxu0 %v2114
    %2390 = vmatprep.subr.bf16.mxu0 %v2110
    %2391 = vmatpush1.bf16.msra.mxu0 %v2109
    %2392 = vmatprep.subr.bf16.mxu0 %v2105
    %2393 = vmatpush1.bf16.msra.mxu0 %v2104
    %2394 = vmatprep.subr.bf16.mxu0 %v2180
    %2395 = vmatpush2.bf16.msra.mxu0 %v2179
    %2396 = vmatprep.subr.bf16.mxu0 %v2175
    %2397 = vmatpush2.bf16.msra.mxu0 %v2174
    %2398 = vmatprep.subr.bf16.mxu0 %v2170
    %2399 = vmatpush2.bf16.msra.mxu0 %v2169
    %2400 = vmatprep.subr.bf16.mxu0 %v2165
    %2401 = vmatpush2.bf16.msra.mxu0 %v2164
    %2402 = vmatprep.subr.bf16.mxu0 %v2160
    %2403 = vmatpush2.bf16.msra.mxu0 %v2159
    %2404 = vmatprep.subr.bf16.mxu0 %v2155
    %2405 = vmatpush2.bf16.msra.mxu0 %v2154
    %2406 = vmatprep.subr.bf16.mxu0 %v2150
    %2407 = vmatpush2.bf16.msra.mxu0 %v2149
    %2408 = vmatprep.subr.bf16.mxu0 %v2145
    %2409 = vmatpush2.bf16.msra.mxu0 %v2144
    %2410 = vmatprep.mubr.bf16.mxu0 %v1655
    %2411 = vmatmul.mubr.bf16.gmra.mxu0 %v1654
    %v2412 = vpop.f32.mrf.mxu0
    %v2413 = vadd.f32 %v1784, %v2412
    %v2414 = vpop.f32.mrf.mxu0
    %v2415 = vadd.f32 %v1788, %v2414
    %v2416 = vpop.f32.mrf.mxu0
    %v2417 = vpop.f32.mrf.mxu0
    %2418 = vdwg.mxu0
    %2419 = vmatprep.subr.bf16.mxu0 0
    %2420 = vmatpush1.bf16.msra.mxu0 0
    %2421 = vmatprep.subr.bf16.mxu0 0
    %2422 = vmatpush1.bf16.msra.mxu0 0
    %2423 = vmatprep.subr.bf16.mxu0 0
    %2424 = vmatpush1.bf16.msra.mxu0 0
    %2425 = vmatprep.subr.bf16.mxu0 0
    %2426 = vmatpush1.bf16.msra.mxu0 0
    %2427 = vmatprep.subr.bf16.mxu0 0
    %2428 = vmatpush1.bf16.msra.mxu0 0
    %2429 = vmatprep.subr.bf16.mxu0 %v2195
    %2430 = vmatpush1.bf16.msra.mxu0 %v2194
    %2431 = vmatprep.subr.bf16.mxu0 %v2190
    %2432 = vmatpush1.bf16.msra.mxu0 %v2189
    %2433 = vmatprep.subr.bf16.mxu0 %v2185
    %2434 = vmatpush1.bf16.msra.mxu0 %v2184
    %2435 = vmatprep.subr.bf16.mxu0 0
    %2436 = vmatpush2.bf16.msra.mxu0 0
    %2437 = vmatprep.subr.bf16.mxu0 0
    %2438 = vmatpush2.bf16.msra.mxu0 0
    %2439 = vmatprep.subr.bf16.mxu0 0
    %2440 = vmatpush2.bf16.msra.mxu0 0
    %2441 = vmatprep.subr.bf16.mxu0 0
    %2442 = vmatpush2.bf16.msra.mxu0 0
    %2443 = vmatprep.subr.bf16.mxu0 0
    %2444 = vmatpush2.bf16.msra.mxu0 0
    %2445 = vmatprep.subr.bf16.mxu0 0
    %2446 = vmatpush2.bf16.msra.mxu0 0
    %2447 = vmatprep.subr.bf16.mxu0 0
    %2448 = vmatpush2.bf16.msra.mxu0 0
    %2449 = vmatprep.subr.bf16.mxu0 0
    %2450 = vmatpush2.bf16.msra.mxu0 0
    %2451 = vmatprep.mubr.bf16.mxu0 0
    %2452 = vmatmul.mubr.bf16.gmra.mxu0 %v2294
    %v2453 = vpop.f32.mrf.mxu0
    %v2454 = vadd.f32 %v2413, %v2453
    %v2455 = vpop.f32.mrf.mxu0
    %v2456 = vadd.f32 %v2415, %v2455
    %v2457 = vpop.f32.mrf.mxu0
    %v2458 = vpop.f32.mrf.mxu0
    %2459 = vdwg.mxu0
    %2460 = vmatprep.subr.bf16.mxu0 0
    %2461 = vmatpush1.bf16.msra.mxu0 %v2141
    %2462 = vmatprep.subr.bf16.mxu0 0
    %2463 = vmatpush1.bf16.msra.mxu0 %v2136
    %2464 = vmatprep.subr.bf16.mxu0 0
    %2465 = vmatpush1.bf16.msra.mxu0 %v2131
    %2466 = vmatprep.subr.bf16.mxu0 0
    %2467 = vmatpush1.bf16.msra.mxu0 %v2126
    %2468 = vmatprep.subr.bf16.mxu0 0
    %2469 = vmatpush1.bf16.msra.mxu0 %v2121
    %2470 = vmatprep.subr.bf16.mxu0 0
    %2471 = vmatpush1.bf16.msra.mxu0 %v2116
    %2472 = vmatprep.subr.bf16.mxu0 0
    %2473 = vmatpush1.bf16.msra.mxu0 %v2111
    %2474 = vmatprep.subr.bf16.mxu0 0
    %2475 = vmatpush1.bf16.msra.mxu0 %v2106
    %2476 = vmatprep.subr.bf16.mxu0 0
    %2477 = vmatpush2.bf16.msra.mxu0 %v2181
    %2478 = vmatprep.subr.bf16.mxu0 0
    %2479 = vmatpush2.bf16.msra.mxu0 %v2176
    %2480 = vmatprep.subr.bf16.mxu0 0
    %2481 = vmatpush2.bf16.msra.mxu0 %v2171
    %2482 = vmatprep.subr.bf16.mxu0 0
    %2483 = vmatpush2.bf16.msra.mxu0 %v2166
    %2484 = vmatprep.subr.bf16.mxu0 0
    %2485 = vmatpush2.bf16.msra.mxu0 %v2161
    %2486 = vmatprep.subr.bf16.mxu0 0
    %2487 = vmatpush2.bf16.msra.mxu0 %v2156
    %2488 = vmatprep.subr.bf16.mxu0 0
    %2489 = vmatpush2.bf16.msra.mxu0 %v2151
    %2490 = vmatprep.subr.bf16.mxu0 0
    %2491 = vmatpush2.bf16.msra.mxu0 %v2146
    %2492 = vmatprep.mubr.bf16.mxu0 %v1655
    %2493 = vmatmul.mubr.bf16.gmra.mxu0 %v1654
    %v2494 = vpop.f32.mrf.mxu0
    %v2495 = vadd.f32 %v1792, %v2494
    %v2496 = vpop.f32.mrf.mxu0
    %v2497 = vpop.f32.mrf.mxu0
    %v2498 = vpop.f32.mrf.mxu0
    %2499 = vdwg.mxu0
    %2500 = vmatprep.subr.bf16.mxu0 0
    %2501 = vmatpush1.bf16.msra.mxu0 0
    %2502 = vmatprep.subr.bf16.mxu0 0
    %2503 = vmatpush1.bf16.msra.mxu0 0
    %2504 = vmatprep.subr.bf16.mxu0 0
    %2505 = vmatpush1.bf16.msra.mxu0 0
    %2506 = vmatprep.subr.bf16.mxu0 0
    %2507 = vmatpush1.bf16.msra.mxu0 0
    %2508 = vmatprep.subr.bf16.mxu0 0
    %2509 = vmatpush1.bf16.msra.mxu0 0
    %2510 = vmatprep.subr.bf16.mxu0 0
    %2511 = vmatpush1.bf16.msra.mxu0 %v2196
    %2512 = vmatprep.subr.bf16.mxu0 0
    %2513 = vmatpush1.bf16.msra.mxu0 %v2191
    %2514 = vmatprep.subr.bf16.mxu0 0
    %2515 = vmatpush1.bf16.msra.mxu0 %v2186
    %2516 = vmatprep.subr.bf16.mxu0 0
    %2517 = vmatpush2.bf16.msra.mxu0 0
    %2518 = vmatprep.subr.bf16.mxu0 0
    %2519 = vmatpush2.bf16.msra.mxu0 0
    %2520 = vmatprep.subr.bf16.mxu0 0
    %2521 = vmatpush2.bf16.msra.mxu0 0
    %2522 = vmatprep.subr.bf16.mxu0 0
    %2523 = vmatpush2.bf16.msra.mxu0 0
    %2524 = vmatprep.subr.bf16.mxu0 0
    %2525 = vmatpush2.bf16.msra.mxu0 0
    %2526 = vmatprep.subr.bf16.mxu0 0
    %2527 = vmatpush2.bf16.msra.mxu0 0
    %2528 = vmatprep.subr.bf16.mxu0 0
    %2529 = vmatpush2.bf16.msra.mxu0 0
    %2530 = vmatprep.subr.bf16.mxu0 0
    %2531 = vmatpush2.bf16.msra.mxu0 0
    %2532 = vmatprep.mubr.bf16.mxu0 0
    %2533 = vmatmul.mubr.bf16.gmra.mxu0 %v2294
    %v2534 = vpop.f32.mrf.mxu0
    %v2535 = vadd.f32 %v2495, %v2534
    %v2536 = vpop.f32.mrf.mxu0
    %v2537 = vpop.f32.mrf.mxu0
    %v2538 = vpop.f32.mrf.mxu0
    %2539 = vdwg.mxu0
    %v2540 = vmax.f32 %v2372, 0.0
    %v2541 = vmax.f32 %v2374, 0.0
    %v2542 = vmax.f32 %v2454, 0.0
    %v2543 = vmax.f32 %v2456, 0.0
    %v2544 = vmax.f32 %v2535, 0.0
    %v2545 = vpack.c.bf16 %v2540, %v2540
    %v2546 = vpack.c.bf16 %v2541, %v2541
    %v2547 = vpack.c.bf16 %v2542, %v2542
    %v2548 = vpack.c.bf16 %v2543, %v2543
    %v2549 = vpack.c.bf16 %v2544, %v2544
    %v2550 = vld [vmem:[%s5] sm:$0xf]
    %v2551 = vld [vmem:[%s5 + $0x4] sm:$0xf]
    %v2552 = vld [vmem:[%s5 + $0x8] sm:$0xf]
    %v2553 = vld [vmem:[%s5 + $0xc] sm:$0xf]
    %v2554 = vld [vmem:[%s5 + $0x10] sm:$0xf]
    %v2555 = vld [vmem:[%s5 + $0x14] sm:$0xf]
    %v2556 = vld [vmem:[%s5 + $0x18] sm:$0xf]
    %v2557 = vld [vmem:[%s5 + $0x1c] sm:$0xf]
    %v2558 = vld [vmem:[%s5 + $0x20] sm:$0xf]
    %v2559 = vld [vmem:[%s5 + $0x24] sm:$0xf]
    %v2560 = vld [vmem:[%s5 + $0x28] sm:$0xf]
    %v2561 = vld [vmem:[%s5 + $0x2c] sm:$0xf]
    %v2562 = vld [vmem:[%s5 + $0x30] sm:$0xf]
    %v2563 = vld [vmem:[%s5 + $0x34] sm:$0xf]
    %v2564 = vld [vmem:[%s5 + $0x38] sm:$0xf]
    %v2565 = vld [vmem:[%s5 + $0x3c] sm:$0xf]
    %v2566 = vld [vmem:[%s5 + $0x40] sm:$0xf]
    %v2567 = vld [vmem:[%s5 + $0x44] sm:$0xf]
    %v2568 = vld [vmem:[%s5 + $0x48] sm:$0xf]
    %v2569 = vld [vmem:[%s5 + $0x4c] sm:$0xf]
    %v2570 = vld [vmem:[%s5 + $0x50] sm:$0xf]
    %v2571 = vld [vmem:[%s5 + $0x54] sm:$0xf]
    %v2572 = vld [vmem:[%s5 + $0x58] sm:$0xf]
    %v2573 = vld [vmem:[%s5 + $0x5c] sm:$0xf]
    %v2574 = vld [vmem:[%s5 + $0x60] sm:$0xf]
    %v2575 = vld [vmem:[%s5 + $0x64] sm:$0xf]
    %v2576 = vld [vmem:[%s5 + $0x68] sm:$0xf]
    %v2577 = vld [vmem:[%s5 + $0x6c] sm:$0xf]
    %v2578 = vld [vmem:[%s5 + $0x70] sm:$0xf]
    %v2579 = vld [vmem:[%s5 + $0x74] sm:$0xf]
    %v2580 = vld [vmem:[%s5 + $0x78] sm:$0xf]
    %v2581 = vld [vmem:[%s5 + $0x7c] sm:$0xf]
    %v2582 = vld [vmem:[%s5 + $0x80] sm:$0xf]
    %v2583 = vld [vmem:[%s5 + $0x84] sm:$0xf]
    %v2584 = vld [vmem:[%s5 + $0x88] sm:$0xf]
    %v2585 = vld [vmem:[%s5 + $0x8c] sm:$0xf]
    %v2586 = vld [vmem:[%s5 + $0x90] sm:$0xf]
    %v2587 = vld [vmem:[%s5 + $0x94] sm:$0xf]
    %v2588 = vld [vmem:[%s5 + $0x98] sm:$0xf]
    %v2589 = vld [vmem:[%s5 + $0x9c] sm:$0xf]
    %v2590 = vld [vmem:[%s5 + $0xa0] sm:$0xf]
    %v2591 = vld [vmem:[%s5 + $0xa4] sm:$0xf]
    %v2592 = vld [vmem:[%s5 + $0xa8] sm:$0xf]
    %v2593 = vld [vmem:[%s5 + $0xac] sm:$0xf]
    %v2594 = vld [vmem:[%s5 + $0xb0] sm:$0xf]
    %v2595 = vld [vmem:[%s5 + $0xb4] sm:$0xf]
    %v2596 = vld [vmem:[%s5 + $0xb8] sm:$0xf]
    %v2597 = vld [vmem:[%s5 + $0xbc] sm:$0xf]
    %v2598 = vld [vmem:[%s5 + $0xc0] sm:$0xf]
    %v2599 = vld [vmem:[%s5 + $0xc4] sm:$0xf]
    %v2600 = vld [vmem:[%s5 + $0xc8] sm:$0xf]
    %v2601 = vld [vmem:[%s5 + $0xcc] sm:$0xf]
    %v2602 = vld [vmem:[%s5 + $0xd0] sm:$0xf]
    %v2603 = vld [vmem:[%s5 + $0xd4] sm:$0xf]
    %v2604 = vld [vmem:[%s5 + $0xd8] sm:$0xf]
    %v2605 = vld [vmem:[%s5 + $0xdc] sm:$0xf]
    %v2606 = vld [vmem:[%s5 + $0xe0] sm:$0xf]
    %v2607 = vld [vmem:[%s5 + $0xe4] sm:$0xf]
    %v2608 = vld [vmem:[%s5 + $0xe8] sm:$0xf]
    %v2609 = vld [vmem:[%s5 + $0xec] sm:$0xf]
    %v2610 = vld [vmem:[%s5 + $0xf0] sm:$0xf]
    %v2611 = vld [vmem:[%s5 + $0xf4] sm:$0xf]
    %v2612 = vld [vmem:[%s5 + $0xf8] sm:$0xf]
    %v2613 = vld [vmem:[%s5 + $0xfc] sm:$0xf]
    %v2614 = vld [vmem:[%s5 + $0x100] sm:$0xf]
    %v2615 = vld [vmem:[%s5 + $0x104] sm:$0xf]
    %v2616 = vld [vmem:[%s5 + $0x108] sm:$0xf]
    %v2617 = vld [vmem:[%s5 + $0x10c] sm:$0xf]
    %v2618 = vld [vmem:[%s5 + $0x110] sm:$0xf]
    %v2619 = vld [vmem:[%s5 + $0x114] sm:$0xf]
    %v2620 = vld [vmem:[%s5 + $0x118] sm:$0xf]
    %v2621 = vld [vmem:[%s5 + $0x11c] sm:$0xf]
    %v2622 = vld [vmem:[%s5 + $0x120] sm:$0xf]
    %v2623 = vld [vmem:[%s5 + $0x124] sm:$0xf]
    %v2624 = vld [vmem:[%s5 + $0x128] sm:$0xf]
    %v2625 = vld [vmem:[%s5 + $0x12c] sm:$0xf]
    %v2626 = vld [vmem:[%s6] sm:$0x1]
    %v2628 = vlaneseq
    %v2629 = vshrl.u32 %v2628, 7
    %v2630 = vsub.s32 0, %v2629
    %v2631 = vrot.slane %v2626, %v2630
    %v2709 = vunpack.c.l.b16 %v2550
    %v2710 = vunpack.c.l.b16 %v2551
    %v2711 = vunpack.c.l.b16 %v2552
    %v2712 = vunpack.c.l.b16 %v2553
    %v2713 = vunpack.c.l.b16 %v2554
    %v2714 = vunpack.c.l.b16 %v2555
    %v2715 = vunpack.c.l.b16 %v2556
    %v2716 = vunpack.c.l.b16 %v2557
    %v2717 = vunpack.c.l.b16 %v2558
    %v2718 = vunpack.c.l.b16 %v2559
    %v2719 = vunpack.c.l.b16 %v2560
    %v2720 = vunpack.c.l.b16 %v2561
    %v2721 = vunpack.c.l.b16 %v2562
    %v2722 = vunpack.c.l.b16 %v2563
    %v2723 = vunpack.c.l.b16 %v2564
    %v2724 = vunpack.c.l.b16 %v2565
    %v2725 = vunpack.c.l.b16 %v2566
    %v2726 = vunpack.c.l.b16 %v2567
    %v2727 = vunpack.c.l.b16 %v2568
    %v2728 = vunpack.c.l.b16 %v2569
    %v2729 = vunpack.c.l.b16 %v2570
    %v2730 = vunpack.c.l.b16 %v2571
    %v2731 = vunpack.c.l.b16 %v2572
    %v2732 = vunpack.c.l.b16 %v2573
    %v2733 = vunpack.c.l.b16 %v2574
    %v2734 = vunpack.c.l.b16 %v2575
    %v2735 = vunpack.c.l.b16 %v2576
    %v2736 = vunpack.c.l.b16 %v2577
    %v2737 = vunpack.c.l.b16 %v2578
    %v2738 = vunpack.c.l.b16 %v2579
    %v2739 = vunpack.c.l.b16 %v2580
    %v2740 = vunpack.c.l.b16 %v2581
    %v2741 = vunpack.c.l.b16 %v2582
    %v2742 = vunpack.c.l.b16 %v2583
    %v2743 = vunpack.c.l.b16 %v2584
    %v2744 = vunpack.c.l.b16 %v2585
    %v2745 = vunpack.c.l.b16 %v2586
    %v2746 = vunpack.c.l.b16 %v2587
    %v2747 = vunpack.c.l.b16 %v2588
    %v2748 = vunpack.c.l.b16 %v2589
    %v2749 = vunpack.c.l.b16 %v2590
    %v2750 = vunpack.c.l.b16 %v2591
    %v2751 = vunpack.c.l.b16 %v2592
    %v2752 = vunpack.c.l.b16 %v2593
    %v2753 = vunpack.c.l.b16 %v2594
    %v2754 = vunpack.c.l.b16 %v2595
    %v2755 = vunpack.c.l.b16 %v2596
    %v2756 = vunpack.c.l.b16 %v2597
    %v2757 = vunpack.c.l.b16 %v2598
    %v2758 = vunpack.c.l.b16 %v2599
    %v2759 = vunpack.c.l.b16 %v2600
    %v2760 = vunpack.c.l.b16 %v2601
    %v2761 = vunpack.c.l.b16 %v2602
    %v2762 = vunpack.c.l.b16 %v2603
    %v2763 = vunpack.c.l.b16 %v2604
    %v2764 = vunpack.c.l.b16 %v2605
    %v2765 = vunpack.c.l.b16 %v2606
    %v2766 = vunpack.c.l.b16 %v2607
    %v2767 = vunpack.c.l.b16 %v2608
    %v2768 = vunpack.c.l.b16 %v2609
    %v2769 = vunpack.c.l.b16 %v2610
    %v2770 = vunpack.c.l.b16 %v2611
    %v2771 = vunpack.c.l.b16 %v2612
    %v2772 = vunpack.c.l.b16 %v2613
    %v2773 = vunpack.c.l.b16 %v2614
    %v2774 = vunpack.c.l.b16 %v2615
    %v2775 = vunpack.c.l.b16 %v2616
    %v2776 = vunpack.c.l.b16 %v2617
    %v2777 = vunpack.c.l.b16 %v2618
    %v2778 = vunpack.c.l.b16 %v2619
    %v2779 = vunpack.c.l.b16 %v2620
    %v2780 = vunpack.c.l.b16 %v2621
    %v2781 = vunpack.c.l.b16 %v2622
    %v2782 = vunpack.c.l.b16 %v2623
    %v2783 = vunpack.c.l.b16 %v2624
    %v2784 = vunpack.c.l.b16 %v2625
    %v2785 = vpack.c.b16 %v2710, %v2709
    %v2786 = vpack.c.b16 %v2712, %v2711
    %v2787 = vpack.c.b16 %v2714, %v2713
    %v2788 = vpack.c.b16 %v2716, %v2715
    %v2789 = vpack.c.b16 %v2718, %v2717
    %v2790 = vpack.c.b16 %v2720, %v2719
    %v2791 = vpack.c.b16 %v2722, %v2721
    %v2792 = vpack.c.b16 %v2724, %v2723
    %v2793 = vpack.c.b16 %v2726, %v2725
    %v2794 = vpack.c.b16 %v2728, %v2727
    %v2795 = vpack.c.b16 %v2730, %v2729
    %v2796 = vpack.c.b16 %v2732, %v2731
    %v2797 = vpack.c.b16 %v2734, %v2733
    %v2798 = vpack.c.b16 %v2736, %v2735
    %v2799 = vpack.c.b16 %v2738, %v2737
    %v2800 = vpack.c.b16 %v2740, %v2739
    %v2801 = vpack.c.b16 %v2742, %v2741
    %v2802 = vpack.c.b16 %v2744, %v2743
    %v2803 = vpack.c.b16 %v2746, %v2745
    %v2804 = vpack.c.b16 %v2748, %v2747
    %v2805 = vpack.c.b16 %v2750, %v2749
    %v2806 = vpack.c.b16 %v2752, %v2751
    %v2807 = vpack.c.b16 %v2754, %v2753
    %v2808 = vpack.c.b16 %v2756, %v2755
    %v2809 = vpack.c.b16 %v2758, %v2757
    %v2810 = vpack.c.b16 %v2760, %v2759
    %v2811 = vpack.c.b16 %v2762, %v2761
    %v2812 = vpack.c.b16 %v2764, %v2763
    %v2813 = vpack.c.b16 %v2766, %v2765
    %v2814 = vpack.c.b16 %v2768, %v2767
    %v2815 = vpack.c.b16 %v2770, %v2769
    %v2816 = vpack.c.b16 %v2772, %v2771
    %v2817 = vpack.c.b16 %v2774, %v2773
    %v2818 = vpack.c.b16 %v2776, %v2775
    %v2819 = vpack.c.b16 %v2778, %v2777
    %v2820 = vpack.c.b16 %v2780, %v2779
    %v2821 = vpack.c.b16 %v2782, %v2781
    %v2822 = vpack.c.b16 %v2784, %v2783
    %vm2861 = vcmask 785408
    %v2863 = vsel %vm2861, %v2549, 0
    %2865 = vmatprep.subr.bf16.mxu0 0
    %2866 = vmatpush1.bf16.msra.mxu0 %v2792
    %2867 = vmatprep.subr.bf16.mxu0 0
    %2868 = vmatpush1.bf16.msra.mxu0 %v2791
    %2869 = vmatprep.subr.bf16.mxu0 0
    %2870 = vmatpush1.bf16.msra.mxu0 %v2790
    %2871 = vmatprep.subr.bf16.mxu0 0
    %2872 = vmatpush1.bf16.msra.mxu0 %v2789
    %2873 = vmatprep.subr.bf16.mxu0 0
    %2874 = vmatpush1.bf16.msra.mxu0 %v2788
    %2875 = vmatprep.subr.bf16.mxu0 0
    %2876 = vmatpush1.bf16.msra.mxu0 %v2787
    %2877 = vmatprep.subr.bf16.mxu0 0
    %2878 = vmatpush1.bf16.msra.mxu0 %v2786
    %2879 = vmatprep.subr.bf16.mxu0 0
    %2880 = vmatpush1.bf16.msra.mxu0 %v2785
    %2881 = vmatprep.subr.bf16.mxu0 0
    %2882 = vmatpush2.bf16.msra.mxu0 %v2800
    %2883 = vmatprep.subr.bf16.mxu0 0
    %2884 = vmatpush2.bf16.msra.mxu0 %v2799
    %2885 = vmatprep.subr.bf16.mxu0 0
    %2886 = vmatpush2.bf16.msra.mxu0 %v2798
    %2887 = vmatprep.subr.bf16.mxu0 0
    %2888 = vmatpush2.bf16.msra.mxu0 %v2797
    %2889 = vmatprep.subr.bf16.mxu0 0
    %2890 = vmatpush2.bf16.msra.mxu0 %v2796
    %2891 = vmatprep.subr.bf16.mxu0 0
    %2892 = vmatpush2.bf16.msra.mxu0 %v2795
    %2893 = vmatprep.subr.bf16.mxu0 0
    %2894 = vmatpush2.bf16.msra.mxu0 %v2794
    %2895 = vmatprep.subr.bf16.mxu0 0
    %2896 = vmatpush2.bf16.msra.mxu0 %v2793
    %2897 = vmatprep.mubr.bf16.mxu0 %v2546
    %2898 = vmatmul.mubr.bf16.gmra.mxu0 %v2545
    %v2899 = vpop.f32.mrf.mxu0
    %v2900 = vadd.f32 %v2631, %v2899
    %v2901 = vpop.f32.mrf.mxu0
    %v2902 = vpop.f32.mrf.mxu0
    %v2903 = vpop.f32.mrf.mxu0
    %2904 = vdwg.mxu0
    %2905 = vmatprep.subr.bf16.mxu0 0
    %2906 = vmatpush1.bf16.msra.mxu0 %v2808
    %2907 = vmatprep.subr.bf16.mxu0 0
    %2908 = vmatpush1.bf16.msra.mxu0 %v2807
    %2909 = vmatprep.subr.bf16.mxu0 0
    %2910 = vmatpush1.bf16.msra.mxu0 %v2806
    %2911 = vmatprep.subr.bf16.mxu0 0
    %2912 = vmatpush1.bf16.msra.mxu0 %v2805
    %2913 = vmatprep.subr.bf16.mxu0 0
    %2914 = vmatpush1.bf16.msra.mxu0 %v2804
    %2915 = vmatprep.subr.bf16.mxu0 0
    %2916 = vmatpush1.bf16.msra.mxu0 %v2803
    %2917 = vmatprep.subr.bf16.mxu0 0
    %2918 = vmatpush1.bf16.msra.mxu0 %v2802
    %2919 = vmatprep.subr.bf16.mxu0 0
    %2920 = vmatpush1.bf16.msra.mxu0 %v2801
    %2921 = vmatprep.subr.bf16.mxu0 0
    %2922 = vmatpush2.bf16.msra.mxu0 %v2816
    %2923 = vmatprep.subr.bf16.mxu0 0
    %2924 = vmatpush2.bf16.msra.mxu0 %v2815
    %2925 = vmatprep.subr.bf16.mxu0 0
    %2926 = vmatpush2.bf16.msra.mxu0 %v2814
    %2927 = vmatprep.subr.bf16.mxu0 0
    %2928 = vmatpush2.bf16.msra.mxu0 %v2813
    %2929 = vmatprep.subr.bf16.mxu0 0
    %2930 = vmatpush2.bf16.msra.mxu0 %v2812
    %2931 = vmatprep.subr.bf16.mxu0 0
    %2932 = vmatpush2.bf16.msra.mxu0 %v2811
    %2933 = vmatprep.subr.bf16.mxu0 0
    %2934 = vmatpush2.bf16.msra.mxu0 %v2810
    %2935 = vmatprep.subr.bf16.mxu0 0
    %2936 = vmatpush2.bf16.msra.mxu0 %v2809
    %2937 = vmatprep.mubr.bf16.mxu0 %v2548
    %2938 = vmatmul.mubr.bf16.gmra.mxu0 %v2547
    %v2939 = vpop.f32.mrf.mxu0
    %v2940 = vadd.f32 %v2900, %v2939
    %v2941 = vpop.f32.mrf.mxu0
    %v2942 = vpop.f32.mrf.mxu0
    %v2943 = vpop.f32.mrf.mxu0
    %2944 = vdwg.mxu0
    %2945 = vmatprep.subr.bf16.mxu0 0
    %2946 = vmatpush1.bf16.msra.mxu0 0
    %2947 = vmatprep.subr.bf16.mxu0 0
    %2948 = vmatpush1.bf16.msra.mxu0 0
    %2949 = vmatprep.subr.bf16.mxu0 0
    %2950 = vmatpush1.bf16.msra.mxu0 %v2822
    %2951 = vmatprep.subr.bf16.mxu0 0
    %2952 = vmatpush1.bf16.msra.mxu0 %v2821
    %2953 = vmatprep.subr.bf16.mxu0 0
    %2954 = vmatpush1.bf16.msra.mxu0 %v2820
    %2955 = vmatprep.subr.bf16.mxu0 0
    %2956 = vmatpush1.bf16.msra.mxu0 %v2819
    %2957 = vmatprep.subr.bf16.mxu0 0
    %2958 = vmatpush1.bf16.msra.mxu0 %v2818
    %2959 = vmatprep.subr.bf16.mxu0 0
    %2960 = vmatpush1.bf16.msra.mxu0 %v2817
    %2961 = vmatprep.subr.bf16.mxu0 0
    %2962 = vmatpush2.bf16.msra.mxu0 0
    %2963 = vmatprep.subr.bf16.mxu0 0
    %2964 = vmatpush2.bf16.msra.mxu0 0
    %2965 = vmatprep.subr.bf16.mxu0 0
    %2966 = vmatpush2.bf16.msra.mxu0 0
    %2967 = vmatprep.subr.bf16.mxu0 0
    %2968 = vmatpush2.bf16.msra.mxu0 0
    %2969 = vmatprep.subr.bf16.mxu0 0
    %2970 = vmatpush2.bf16.msra.mxu0 0
    %2971 = vmatprep.subr.bf16.mxu0 0
    %2972 = vmatpush2.bf16.msra.mxu0 0
    %2973 = vmatprep.subr.bf16.mxu0 0
    %2974 = vmatpush2.bf16.msra.mxu0 0
    %2975 = vmatprep.subr.bf16.mxu0 0
    %2976 = vmatpush2.bf16.msra.mxu0 0
    %2977 = vmatprep.mubr.bf16.mxu0 0
    %2978 = vmatmul.mubr.bf16.gmra.mxu0 %v2863
    %v2979 = vpop.f32.mrf.mxu0
    %v2980 = vadd.f32 %v2940, %v2979
    %v2981 = vpop.f32.mrf.mxu0
    %v2982 = vpop.f32.mrf.mxu0
    %v2983 = vpop.f32.mrf.mxu0
    %2984 = vdwg.mxu0
    %2985 = vst [vmem:[#allocation2] sm:$0xff] %v2980
    // Predicated region
    $region30: #{tpu_custom_call.1} parent=1 // pred_check
      _
    $region31: #{tpu_custom_call.1} parent=1 // pred_check_branch
      %2987 = sbr.rel (0) target = $region33
    $region32: #{tpu_custom_call.1} parent=1 // pred_region
      %s2989 = ssub.s32 128, 128
      %2990 = vsyncadd [#allocation3], %s2989
      %s2992 = sshll.u32 [#allocation2], 4
      %s2993 = int_to_ptr.vmem [resolvable:$true] %s2992
      %2995 = dma.vmem_to_hbm [thread:$0]  %s2993, 128, %s7, [#allocation3]
    $region33: #{tpu_custom_call.1} parent=1 // pred_fallthru
      _
    // Predicated region
    $region34: #{tpu_custom_call.1} parent=1 // pred_check
      _
    $region35: #{tpu_custom_call.1} parent=1 // pred_check_branch
      %2997 = sbr.rel (0) target = $region37
    $region36: #{tpu_custom_call.1} parent=1 // pred_region
      %2998 = dma.done [#allocation3], 128
    $region37: #{tpu_custom_call.1} parent=1 // pred_fallthru
      _
    %2999 = vsyncpa [#allocation3], 1

</llo_original>
